<compile_context>
chip_gen: v6e
topology: v6e:2x2x1
jax: 0.10.0
libtpu: 0.0.40
codegen_flags: <defaults>
</compile_context>

<pallas_src>
import math
import functools

import jax
import jax.numpy as jnp
from jax.experimental import pallas as pl
from jax.experimental.pallas import tpu as pltpu


NEG_INF = -1000000000.0   # matches torch masked_fill(mask == 0, -1e9)


# ------------------------------- kernel --------------------------------------


def _torch_layernorm(x, a2, b2, eps=1e-6):
    """Matches the module's LayerNorm: unbiased (Bessel) std, eps added to std."""
    d = x.shape[-1]
    mean = jnp.mean(x, axis=-1, keepdims=True)
    xc = x - mean
    var = jnp.sum(xc * xc, axis=-1, keepdims=True) * (1.0 / (d - 1))
    inv = pl.reciprocal(jnp.sqrt(var) + eps, approx=False)   # exact, EUP slot
    return a2 * xc * inv + b2


def aoa_refiner_layer_kernel(x_ref, neg_ref, wf_ref, bf_ref, wag_ref,
                             lna_ref, lnb_ref, fa_ref, fb_ref,
                             out_ref, res_ref, *, num_heads):
    """One (batch, layer) grid step of the AoA refiner.

    The residual stream lives in `res_ref` (VMEM scratch, f32) across the layer
    axis; per-layer weights are streamed in via their layer-indexed BlockSpecs.
    """
    l = pl.program_id(1)
    num_layers = pl.num_programs(1)
    S, D = res_ref.shape
    H = num_heads
    dk = D // H
    scale = 1.0 / math.sqrt(dk)

    # Layer 0 of each batch: load the residual stream from the input block.
    @pl.when(l == 0)
    def _():
        res_ref[...] = x_ref[...].reshape(S, D)

    x = res_ref[...]                                              # (S, D) f32
    xn = _torch_layernorm(x, lna_ref[...].reshape(1, D),
                          lnb_ref[...].reshape(1, D))

    # Fused xn-side projection: [ q | k | v | xn@Wx_a | xn@Wx_g ] (+ folded biases).
    wf = wf_ref[...].reshape(D, 5 * D)
    proj = jnp.dot(xn.astype(wf.dtype), wf,
                   preferred_element_type=jnp.float32)
    proj = proj + bf_ref[...].reshape(1, 5 * D)
    q = proj[:, 0 * D:1 * D]
    k = proj[:, 1 * D:2 * D]
    v = proj[:, 2 * D:3 * D]
    xa = proj[:, 3 * D:4 * D]
    xg = proj[:, 4 * D:5 * D]

    # Head split (lane-aligned slices when dk % 128 == 0) + head-batched attention.
    qh = jnp.stack([q[:, h * dk:(h + 1) * dk] for h in range(H)], axis=0)
    kh = jnp.stack([k[:, h * dk:(h + 1) * dk] for h in range(H)], axis=0)
    vh = jnp.stack([v[:, h * dk:(h + 1) * dk] for h in range(H)], axis=0)

    s = jnp.einsum('hqd,hkd->hqk', qh, kh,
                   preferred_element_type=jnp.float32) * scale    # (H, S, S)
    s = s + neg_ref[...].reshape(1, 1, S)                         # additive key mask
    s = s - jnp.max(s, axis=-1, keepdims=True)
    p = jnp.exp(s)
    p = p * pl.reciprocal(jnp.sum(p, axis=-1, keepdims=True), approx=False)
    o = jnp.einsum('hqk,hkd->hqd', p, vh,
                   preferred_element_type=jnp.float32)            # (H, S, dk)

    # Concat heads once (lane-aligned at dk=128) and do ONE K=D AoA matmul.
    attn = jnp.concatenate([o[h] for h in range(H)], axis=-1)     # (S, D)
    wag = wag_ref[...].reshape(D, 2 * D)
    ag = jnp.dot(attn.astype(wag.dtype), wag,
                 preferred_element_type=jnp.float32)              # (S, 2D)

    # GLU (a * sigmoid(g)) + residual.
    a = ag[:, :D] + xa
    g = ag[:, D:] + xg
    res_ref[...] = x + a * jax.nn.sigmoid(g)

    # Last layer: final LayerNorm and write this batch's output block.
    @pl.when(l == num_layers - 1)
    def _():
        out = _torch_layernorm(res_ref[...], fa_ref[...], fb_ref[...])
        out_ref[...] = out.reshape(1, S, D)


# ------------------------------ JAX wrapper -----------------------------------


def make_refiner_call(B, S, D, L, num_heads):
    kern = functools.partial(aoa_refiner_layer_kernel, num_heads=num_heads)
    bmap = lambda b, l: (b, 0, 0)      # per-batch block, resident across layers
    lmap = lambda b, l: (l, 0, 0)      # per-layer weight streaming
    cmap = lambda b, l: (0, 0)         # final-LN params, always resident
    return pl.pallas_call(
        kern,
        out_shape=jax.ShapeDtypeStruct((B, S, D), jnp.float32),
        grid=(B, L),
        in_specs=[
            pl.BlockSpec((1, S, D), bmap),          # x (residual init)
            pl.BlockSpec((1, 1, S), bmap),          # additive mask bias
            pl.BlockSpec((1, D, 5 * D), lmap),      # fused xn-side weights (per layer)
            pl.BlockSpec((1, 1, 5 * D), lmap),      # fused biases (per layer)
            pl.BlockSpec((1, D, 2 * D), lmap),      # attn-side AoA weight (per layer)
            pl.BlockSpec((1, 1, D), lmap),          # per-layer LN scale
            pl.BlockSpec((1, 1, D), lmap),          # per-layer LN bias
            pl.BlockSpec((1, D), cmap),             # final LN scale
            pl.BlockSpec((1, D), cmap),             # final LN bias
        ],
        out_specs=pl.BlockSpec((1, S, D), bmap),
        scratch_shapes=[pltpu.VMEM((S, D), jnp.float32)],   # residual stream
        compiler_params=pltpu.CompilerParams(
            dimension_semantics=("parallel", "arbitrary"),
            # Tune per generation: plenty of headroom on v5e/v6e (128 MiB), keep
            # below v7x's 64 MiB physical VMEM.  (v5e: consider Buffered(3) on
            # the weight specs if weight DMA is still exposed.)
            vmem_limit_bytes=32 * 1024 * 1024),
    )


def init_params(key, D, num_layers=6):
    """Synthetic per-layer params, stacked over layers (leading dim = L).
    PyTorch Linear stores (out, in); we generate the transposed (in, out)
    layout directly (same uniform init distribution)."""
    L = num_layers
    ks = jax.random.split(key, 8)
    lim = 1.0 / math.sqrt(D)
    lim2 = 1.0 / math.sqrt(2 * D)
    u = lambda k, shape, l: jax.random.uniform(k, shape, jnp.float32, -l, l)
    return {
        "wq_t": u(ks[0], (L, D, D), lim),
        "bq": u(ks[1], (L, D), lim),
        "wk_t": u(ks[2], (L, D, D), lim),
        "bk": u(ks[3], (L, D), lim),
        "wv_t": u(ks[4], (L, D, D), lim),
        "bv": u(ks[5], (L, D), lim),
        "waoa_t": u(ks[6], (L, 2 * D, 2 * D), lim2),   # (in=2D, out=2D)
        "baoa": u(ks[7], (L, 2 * D), lim2),
        "ln_a": jnp.ones((L, D), jnp.float32),
        "ln_b": jnp.zeros((L, D), jnp.float32),
        "final_a": jnp.ones((D,), jnp.float32),
        "final_b": jnp.zeros((D,), jnp.float32),
    }


@functools.partial(jax.jit,
                   static_argnames=("num_heads", "num_layers", "param_dtype"))
def aoa_refiner_core(x, mask, params, num_heads, num_layers=6,
                     param_dtype=jnp.bfloat16):
    B, S, D = x.shape
    assert D % num_heads == 0
    L = num_layers
    # Fused xn-side weight: [Wq^T | Wk^T | Wv^T | xn-rows of W_aoa^T ('a' then 'g')].
    w_fused = jnp.concatenate(
        [params["wq_t"], params["wk_t"], params["wv_t"],
         params["waoa_t"][:, D:, :]], axis=2).astype(param_dtype)    # (L, D, 5D)
    b_fused = jnp.concatenate(
        [params["bq"], params["bk"], params["bv"], params["baoa"]],
        axis=1)[:, None, :].astype(jnp.float32)                      # (L, 1, 5D)
    w_attn = params["waoa_t"][:, :D, :].astype(param_dtype)          # (L, D, 2D)
    # Additive attention-mask bias, built once (mask assumed binary {0,1}).
    neg = jnp.where(mask.reshape(B, 1, S) == 0.0, NEG_INF, 0.0).astype(jnp.float32)
    call = make_refiner_call(B, S, D, L, num_heads)
    return call(x.astype(jnp.float32), neg, w_fused, b_fused, w_attn,
                params["ln_a"][:, None, :], params["ln_b"][:, None, :],
                params["final_a"][None, :], params["final_b"][None, :])


# --------------------------- pure-JAX reference -------------------------------


def aoa_refiner_reference(x, mask, params, num_heads, num_layers=6):
    """Direct jnp transcription of the PyTorch module (eval mode)."""
    B, S, D = x.shape
    H, dk = num_heads, D // num_heads
    hp = jax.lax.Precision.HIGHEST
    m = mask.reshape(B, 1, 1, S)

    def ln(z, a, b, eps=1e-6):
        mean = z.mean(-1, keepdims=True)
        zc = z - mean
        var = (zc * zc).sum(-1, keepdims=True) / (z.shape[-1] - 1)
        return a * zc / (jnp.sqrt(var) + eps) + b

    for l in range(num_layers):
        xn = ln(x, params["ln_a"][l], params["ln_b"][l])
        q = jnp.einsum("bsd,de->bse", xn, params["wq_t"][l], precision=hp) + params["bq"][l]
        k = jnp.einsum("bsd,de->bse", xn, params["wk_t"][l], precision=hp) + params["bk"][l]
        v = jnp.einsum("bsd,de->bse", xn, params["wv_t"][l], precision=hp) + params["bv"][l]
        qh = q.reshape(B, S, H, dk).transpose(0, 2, 1, 3)
        kh = k.reshape(B, S, H, dk).transpose(0, 2, 1, 3)
        vh = v.reshape(B, S, H, dk).transpose(0, 2, 1, 3)
        s = jnp.einsum("bhqd,bhkd->bhqk", qh, kh, precision=hp) / math.sqrt(dk)
        s = jnp.where(m == 0.0, NEG_INF, s)
        p = jax.nn.softmax(s, axis=-1)
        o = jnp.einsum("bhqk,bhkd->bhqd", p, vh, precision=hp)
        attn = o.transpose(0, 2, 1, 3).reshape(B, S, D)
        cat = jnp.concatenate([attn, xn], axis=-1)
        y = jnp.einsum("bsd,de->bse", cat, params["waoa_t"][l], precision=hp) + params["baoa"][l]
        x = x + y[..., :D] * jax.nn.sigmoid(y[..., D:])
    return ln(x, params["final_a"], params["final_b"])


# --------------------------------- main ---------------------------------------

if __name__ == "__main__":
    # Lane-aligned small config: dk = D/H = 128 keeps all per-head slices and the
    # head concat as cheap aligned views (mirrors the production layout rule).
    B, S, D, H = 2, 8, 256, 2     # batch, seq (regions), rnn_size, num_heads
    L = 6

    key = jax.random.PRNGKey(0)
    k_x, k_p = jax.random.split(key)
    x = jax.random.normal(k_x, (B, S, D), jnp.float32)
    # attention mask: batch 0 fully valid, batch 1 has its last 2 positions masked.
    mask = jnp.ones((B, S), jnp.float32).at[1, S - 2:].set(0.0)

    params = init_params(k_p, D, num_layers=L)
    ref = aoa_refiner_reference(x, mask, params, num_heads=H, num_layers=L)

    # f32 weight path: tight parity with the PyTorch-equivalent reference.
    out_f32 = jax.block_until_ready(
        aoa_refiner_core(x, mask, params, num_heads=H, num_layers=L,
                         param_dtype=jnp.float32))
    assert out_f32.shape == (B, S, D) and out_f32.dtype == jnp.float32
    assert bool(jnp.all(jnp.isfinite(out_f32)))
    err_f32 = float(jnp.max(jnp.abs(out_f32 - ref)))
    assert err_f32 < 5e-2, f"f32 path: max abs error vs reference: {err_f32}"

    # bf16 weight-streaming path (production config): looser tolerance.
    out_bf16 = jax.block_until_ready(
        aoa_refiner_core(x, mask, params, num_heads=H, num_layers=L,
                         param_dtype=jnp.bfloat16))
    assert out_bf16.shape == (B, S, D) and out_bf16.dtype == jnp.float32
    assert bool(jnp.all(jnp.isfinite(out_bf16)))
    err_bf16 = float(jnp.max(jnp.abs(out_bf16 - ref)))
    assert err_bf16 < 2e-1, f"bf16 path: max abs error vs reference: {err_bf16}"

    print("KERNEL_OK")
</pallas_src>

<mosaic_0001>
module attributes {stable_mosaic.version = 11 : i64} {
  func.func @aoa_refiner_layer_kernel(%arg0: i32, %arg1: i32, %arg2: memref<1x8x256xf32, #tpu.memory_space<vmem>>, %arg3: memref<1x1x8xf32, #tpu.memory_space<vmem>>, %arg4: memref<1x256x1280xf32, #tpu.memory_space<vmem>>, %arg5: memref<1x1x1280xf32, #tpu.memory_space<vmem>>, %arg6: memref<1x256x512xf32, #tpu.memory_space<vmem>>, %arg7: memref<1x1x256xf32, #tpu.memory_space<vmem>>, %arg8: memref<1x1x256xf32, #tpu.memory_space<vmem>>, %arg9: memref<1x256xf32, #tpu.memory_space<vmem>>, %arg10: memref<1x256xf32, #tpu.memory_space<vmem>>, %arg11: memref<1x8x256xf32, #tpu.memory_space<vmem>>, %arg12: memref<8x256xf32, #tpu.memory_space<vmem>>) attributes {dimension_semantics = [#tpu.dimension_semantics<parallel>, #tpu.dimension_semantics<arbitrary>], iteration_bounds = array<i64: 2, 6>, scalar_prefetch = 0 : i64, scratch_operands = 1 : i64, tpu.core_type = #tpu.core_type<tc>, window_params = [{transform_indices = @transform_0, window_bounds = array<i64: 1, 8, 256>}, {transform_indices = @transform_1, window_bounds = array<i64: 1, 1, 8>}, {transform_indices = @transform_2, window_bounds = array<i64: 1, 256, 1280>}, {transform_indices = @transform_3, window_bounds = array<i64: 1, 1, 1280>}, {transform_indices = @transform_4, window_bounds = array<i64: 1, 256, 512>}, {transform_indices = @transform_5, window_bounds = array<i64: 1, 1, 256>}, {transform_indices = @transform_6, window_bounds = array<i64: 1, 1, 256>}, {pipeline_mode = #tpu.pipeline_mode<synchronous>, transform_indices = @transform_7, window_bounds = array<i64: 1, 256>}, {pipeline_mode = #tpu.pipeline_mode<synchronous>, transform_indices = @transform_8, window_bounds = array<i64: 1, 256>}, {transform_indices = @transform_9, window_bounds = array<i64: 1, 8, 256>}]} {
    %c0_i32 = arith.constant 0 : i32
    %0 = arith.cmpi eq, %arg1, %c0_i32 : i32
    %1 = arith.extui %0 : i1 to i32
    %c0_i32_0 = arith.constant 0 : i32
    %2 = arith.cmpi ne, %1, %c0_i32_0 : i32
    scf.if %2 {
      %c0_35 = arith.constant 0 : index
      %c0_36 = arith.constant 0 : index
      %c0_37 = arith.constant 0 : index
      %96 = vector.load %arg2[%c0_35, %c0_36, %c0_37] : memref<1x8x256xf32, #tpu.memory_space<vmem>>, vector<1x8x256xf32>
      %97 = vector.shape_cast %96 : vector<1x8x256xf32> to vector<8x256xf32>
      %c0_38 = arith.constant 0 : index
      %c0_39 = arith.constant 0 : index
      %98 = vector.load %arg12[%c0_38, %c0_39] : memref<8x256xf32, #tpu.memory_space<vmem>>, vector<8x256xf32>
      tpu.vector_store %arg12[%c0_38, %c0_39], %97 {strides = array<i32>} : memref<8x256xf32, #tpu.memory_space<vmem>>, vector<8x256xf32>,
    } else {
    }
    %c0 = arith.constant 0 : index
    %c0_1 = arith.constant 0 : index
    %3 = vector.load %arg12[%c0, %c0_1] : memref<8x256xf32, #tpu.memory_space<vmem>>, vector<8x256xf32>
    %c0_2 = arith.constant 0 : index
    %c0_3 = arith.constant 0 : index
    %c0_4 = arith.constant 0 : index
    %4 = vector.load %arg7[%c0_2, %c0_3, %c0_4] : memref<1x1x256xf32, #tpu.memory_space<vmem>>, vector<1x1x256xf32>
    %5 = vector.shape_cast %4 : vector<1x1x256xf32> to vector<1x256xf32>
    %c0_5 = arith.constant 0 : index
    %c0_6 = arith.constant 0 : index
    %c0_7 = arith.constant 0 : index
    %6 = vector.load %arg8[%c0_5, %c0_6, %c0_7] : memref<1x1x256xf32, #tpu.memory_space<vmem>>, vector<1x1x256xf32>
    %7 = vector.shape_cast %6 : vector<1x1x256xf32> to vector<1x256xf32>
    %cst = arith.constant dense<0.000000e+00> : vector<8xf32>
    %8 = vector.multi_reduction <add>, %3, %cst [1] : vector<8x256xf32> to vector<8xf32>
    %9 = vector.shape_cast %8 : vector<8xf32> to vector<8x1xf32>
    %cst_8 = arith.constant 2.560000e+02 : f32
    %10 = vector.broadcast %cst_8 : f32 to vector<8x1xf32>
    %11 = arith.divf %9, %10 : vector<8x1xf32>
    %12 = vector.broadcast %11 : vector<8x1xf32> to vector<8x256xf32>
    %13 = arith.subf %3, %12 : vector<8x256xf32>
    %14 = arith.mulf %13, %13 : vector<8x256xf32>
    %cst_9 = arith.constant dense<0.000000e+00> : vector<8xf32>
    %15 = vector.multi_reduction <add>, %14, %cst_9 [1] : vector<8x256xf32> to vector<8xf32>
    %16 = vector.shape_cast %15 : vector<8xf32> to vector<8x1xf32>
    %cst_10 = arith.constant 0.00392156886 : f32
    %17 = vector.broadcast %cst_10 : f32 to vector<8x1xf32>
    %18 = arith.mulf %16, %17 : vector<8x1xf32>
    %19 = math.sqrt %18 : vector<8x1xf32>
    %cst_11 = arith.constant 9.99999997E-7 : f32
    %20 = vector.broadcast %cst_11 : f32 to vector<8x1xf32>
    %21 = arith.addf %19, %20 : vector<8x1xf32>
    %22 = tpu.reciprocal %21 : vector<8x1xf32> -> vector<8x1xf32>
    %23 = vector.broadcast %5 : vector<1x256xf32> to vector<8x256xf32>
    %24 = arith.mulf %23, %13 : vector<8x256xf32>
    %25 = vector.broadcast %22 : vector<8x1xf32> to vector<8x256xf32>
    %26 = arith.mulf %24, %25 : vector<8x256xf32>
    %27 = vector.broadcast %7 : vector<1x256xf32> to vector<8x256xf32>
    %28 = arith.addf %26, %27 : vector<8x256xf32>
    %c0_12 = arith.constant 0 : index
    %c0_13 = arith.constant 0 : index
    %c0_14 = arith.constant 0 : index
    %29 = vector.load %arg4[%c0_12, %c0_13, %c0_14] : memref<1x256x1280xf32, #tpu.memory_space<vmem>>, vector<1x256x1280xf32>
    %30 = vector.shape_cast %29 : vector<1x256x1280xf32> to vector<256x1280xf32>
    %cst_15 = arith.constant dense<0.000000e+00> : vector<8x1280xf32>
    %31 = tpu.matmul %28, %30, %cst_15 {dimension_numbers = #tpu.dot_dimension_numbers<[1], [0], [0], [1], [0, 0, 1, 1], [], []>} : vector<8x256xf32>, vector<256x1280xf32>, vector<8x1280xf32> -> vector<8x1280xf32>
    %c0_16 = arith.constant 0 : index
    %c0_17 = arith.constant 0 : index
    %c0_18 = arith.constant 0 : index
    %32 = vector.load %arg5[%c0_16, %c0_17, %c0_18] : memref<1x1x1280xf32, #tpu.memory_space<vmem>>, vector<1x1x1280xf32>
    %33 = vector.shape_cast %32 : vector<1x1x1280xf32> to vector<1x1280xf32>
    %34 = vector.broadcast %33 : vector<1x1280xf32> to vector<8x1280xf32>
    %35 = arith.addf %31, %34 : vector<8x1280xf32>
    %36 = vector.extract_strided_slice %35 {offsets = [0, 0], sizes = [8, 256], strides = [1, 1]} : vector<8x1280xf32> to vector<8x256xf32>
    %37 = vector.extract_strided_slice %35 {offsets = [0, 256], sizes = [8, 256], strides = [1, 1]} : vector<8x1280xf32> to vector<8x256xf32>
    %38 = vector.extract_strided_slice %35 {offsets = [0, 512], sizes = [8, 256], strides = [1, 1]} : vector<8x1280xf32> to vector<8x256xf32>
    %39 = vector.extract_strided_slice %35 {offsets = [0, 768], sizes = [8, 256], strides = [1, 1]} : vector<8x1280xf32> to vector<8x256xf32>
    %40 = vector.extract_strided_slice %35 {offsets = [0, 1024], sizes = [8, 256], strides = [1, 1]} : vector<8x1280xf32> to vector<8x256xf32>
    %41 = vector.extract_strided_slice %36 {offsets = [0, 0], sizes = [8, 128], strides = [1, 1]} : vector<8x256xf32> to vector<8x128xf32>
    %42 = vector.extract_strided_slice %36 {offsets = [0, 128], sizes = [8, 128], strides = [1, 1]} : vector<8x256xf32> to vector<8x128xf32>
    %43 = vector.shape_cast %41 : vector<8x128xf32> to vector<1x8x128xf32>
    %44 = vector.shape_cast %42 : vector<8x128xf32> to vector<1x8x128xf32>
    %45 = tpu.concatenate %43, %44 in 0 : vector<1x8x128xf32>, vector<1x8x128xf32> -> vector<2x8x128xf32>
    %46 = vector.extract_strided_slice %37 {offsets = [0, 0], sizes = [8, 128], strides = [1, 1]} : vector<8x256xf32> to vector<8x128xf32>
    %47 = vector.extract_strided_slice %37 {offsets = [0, 128], sizes = [8, 128], strides = [1, 1]} : vector<8x256xf32> to vector<8x128xf32>
    %48 = vector.shape_cast %46 : vector<8x128xf32> to vector<1x8x128xf32>
    %49 = vector.shape_cast %47 : vector<8x128xf32> to vector<1x8x128xf32>
    %50 = tpu.concatenate %48, %49 in 0 : vector<1x8x128xf32>, vector<1x8x128xf32> -> vector<2x8x128xf32>
    %51 = vector.extract_strided_slice %38 {offsets = [0, 0], sizes = [8, 128], strides = [1, 1]} : vector<8x256xf32> to vector<8x128xf32>
    %52 = vector.extract_strided_slice %38 {offsets = [0, 128], sizes = [8, 128], strides = [1, 1]} : vector<8x256xf32> to vector<8x128xf32>
    %53 = vector.shape_cast %51 : vector<8x128xf32> to vector<1x8x128xf32>
    %54 = vector.shape_cast %52 : vector<8x128xf32> to vector<1x8x128xf32>
    %55 = tpu.concatenate %53, %54 in 0 : vector<1x8x128xf32>, vector<1x8x128xf32> -> vector<2x8x128xf32>
    "tpu.trace_start"() <{level = 10 : i32, message = "hqd,hkd->hqk"}> : () -> ()
    %cst_19 = arith.constant dense<0.000000e+00> : vector<2x8x8xf32>
    %56 = tpu.matmul %45, %50, %cst_19 {dimension_numbers = #tpu.dot_dimension_numbers<[2], [2], [1], [1], [0, 0, 0, 1, 1, 1], [0], [0]>} : vector<2x8x128xf32>, vector<2x8x128xf32>, vector<2x8x8xf32> -> vector<2x8x8xf32>
    "tpu.trace_stop"() : () -> ()
    %cst_20 = arith.constant 0.0883883461 : f32
    %57 = vector.broadcast %cst_20 : f32 to vector<2x8x8xf32>
    %58 = arith.mulf %56, %57 : vector<2x8x8xf32>
    %c0_21 = arith.constant 0 : index
    %c0_22 = arith.constant 0 : index
    %c0_23 = arith.constant 0 : index
    %59 = vector.load %arg3[%c0_21, %c0_22, %c0_23] : memref<1x1x8xf32, #tpu.memory_space<vmem>>, vector<1x1x8xf32>
    %60 = vector.broadcast %59 : vector<1x1x8xf32> to vector<2x8x8xf32>
    %61 = arith.addf %58, %60 : vector<2x8x8xf32>
    %cst_24 = arith.constant dense<0xFF800000> : vector<2x8xf32>
    %62 = vector.multi_reduction <maximumf>, %61, %cst_24 [2] : vector<2x8x8xf32> to vector<2x8xf32>
    %63 = vector.shape_cast %62 : vector<2x8xf32> to vector<2x8x1xf32>
    %64 = vector.broadcast %63 : vector<2x8x1xf32> to vector<2x8x8xf32>
    %65 = arith.subf %61, %64 : vector<2x8x8xf32>
    %66 = math.exp %65 : vector<2x8x8xf32>
    %cst_25 = arith.constant dense<0.000000e+00> : vector<2x8xf32>
    %67 = vector.multi_reduction <add>, %66, %cst_25 [2] : vector<2x8x8xf32> to vector<2x8xf32>
    %68 = vector.shape_cast %67 : vector<2x8xf32> to vector<2x8x1xf32>
    %69 = tpu.reciprocal %68 : vector<2x8x1xf32> -> vector<2x8x1xf32>
    %70 = vector.broadcast %69 : vector<2x8x1xf32> to vector<2x8x8xf32>
    %71 = arith.mulf %66, %70 : vector<2x8x8xf32>
    "tpu.trace_start"() <{level = 10 : i32, message = "hqk,hkd->hqd"}> : () -> ()
    %cst_26 = arith.constant dense<0.000000e+00> : vector<2x8x128xf32>
    %72 = tpu.matmul %71, %55, %cst_26 {dimension_numbers = #tpu.dot_dimension_numbers<[2], [1], [1], [2], [0, 0, 0, 1, 1, 2], [0], [0]>} : vector<2x8x8xf32>, vector<2x8x128xf32>, vector<2x8x128xf32> -> vector<2x8x128xf32>
    "tpu.trace_stop"() : () -> ()
    %73 = vector.extract_strided_slice %72 {offsets = [0, 0, 0], sizes = [1, 8, 128], strides = [1, 1, 1]} : vector<2x8x128xf32> to vector<1x8x128xf32>
    %74 = vector.shape_cast %73 : vector<1x8x128xf32> to vector<8x128xf32>
    %75 = vector.extract_strided_slice %72 {offsets = [1, 0, 0], sizes = [1, 8, 128], strides = [1, 1, 1]} : vector<2x8x128xf32> to vector<1x8x128xf32>
    %76 = vector.shape_cast %75 : vector<1x8x128xf32> to vector<8x128xf32>
    %77 = tpu.concatenate %74, %76 in 1 : vector<8x128xf32>, vector<8x128xf32> -> vector<8x256xf32>
    %c0_27 = arith.constant 0 : index
    %c0_28 = arith.constant 0 : index
    %c0_29 = arith.constant 0 : index
    %78 = vector.load %arg6[%c0_27, %c0_28, %c0_29] : memref<1x256x512xf32, #tpu.memory_space<vmem>>, vector<1x256x512xf32>
    %79 = vector.shape_cast %78 : vector<1x256x512xf32> to vector<256x512xf32>
    %cst_30 = arith.constant dense<0.000000e+00> : vector<8x512xf32>
    %80 = tpu.matmul %77, %79, %cst_30 {dimension_numbers = #tpu.dot_dimension_numbers<[1], [0], [0], [1], [0, 0, 1, 1], [], []>} : vector<8x256xf32>, vector<256x512xf32>, vector<8x512xf32> -> vector<8x512xf32>
    %81 = vector.extract_strided_slice %80 {offsets = [0, 0], sizes = [8, 256], strides = [1, 1]} : vector<8x512xf32> to vector<8x256xf32>
    %82 = arith.addf %81, %39 : vector<8x256xf32>
    %83 = vector.extract_strided_slice %80 {offsets = [0, 256], sizes = [8, 256], strides = [1, 1]} : vector<8x512xf32> to vector<8x256xf32>
    %84 = arith.addf %83, %40 : vector<8x256xf32>
    %85 = arith.negf %84 : vector<8x256xf32>
    %86 = math.exp %85 : vector<8x256xf32>
    %cst_31 = arith.constant 1.000000e+00 : f32
    %87 = vector.broadcast %cst_31 : f32 to vector<8x256xf32>
    %88 = arith.addf %87, %86 : vector<8x256xf32>
    %89 = arith.divf %87, %88 : vector<8x256xf32>
    %90 = arith.mulf %82, %89 : vector<8x256xf32>
    %91 = arith.addf %3, %90 : vector<8x256xf32>
    %c0_32 = arith.constant 0 : index
    %c0_33 = arith.constant 0 : index
    %92 = vector.load %arg12[%c0_32, %c0_33] : memref<8x256xf32, #tpu.memory_space<vmem>>, vector<8x256xf32>
    tpu.vector_store %arg12[%c0_32, %c0_33], %91 {strides = array<i32>} : memref<8x256xf32, #tpu.memory_space<vmem>>, vector<8x256xf32>,
    %c5_i32 = arith.constant 5 : i32
    %93 = arith.cmpi eq, %arg1, %c5_i32 : i32
    %94 = arith.extui %93 : i1 to i32
    %c0_i32_34 = arith.constant 0 : i32
    %95 = arith.cmpi ne, %94, %c0_i32_34 : i32
    scf.if %95 {
      %c0_35 = arith.constant 0 : index
      %c0_36 = arith.constant 0 : index
      %96 = vector.load %arg12[%c0_35, %c0_36] : memref<8x256xf32, #tpu.memory_space<vmem>>, vector<8x256xf32>
      %c0_37 = arith.constant 0 : index
      %c0_38 = arith.constant 0 : index
      %97 = vector.load %arg9[%c0_37, %c0_38] : memref<1x256xf32, #tpu.memory_space<vmem>>, vector<1x256xf32>
      %c0_39 = arith.constant 0 : index
      %c0_40 = arith.constant 0 : index
      %98 = vector.load %arg10[%c0_39, %c0_40] : memref<1x256xf32, #tpu.memory_space<vmem>>, vector<1x256xf32>
      %cst_41 = arith.constant dense<0.000000e+00> : vector<8xf32>
      %99 = vector.multi_reduction <add>, %96, %cst_41 [1] : vector<8x256xf32> to vector<8xf32>
      %100 = vector.shape_cast %99 : vector<8xf32> to vector<8x1xf32>
      %cst_42 = arith.constant 2.560000e+02 : f32
      %101 = vector.broadcast %cst_42 : f32 to vector<8x1xf32>
      %102 = arith.divf %100, %101 : vector<8x1xf32>
      %103 = vector.broadcast %102 : vector<8x1xf32> to vector<8x256xf32>
      %104 = arith.subf %96, %103 : vector<8x256xf32>
      %105 = arith.mulf %104, %104 : vector<8x256xf32>
      %cst_43 = arith.constant dense<0.000000e+00> : vector<8xf32>
      %106 = vector.multi_reduction <add>, %105, %cst_43 [1] : vector<8x256xf32> to vector<8xf32>
      %107 = vector.shape_cast %106 : vector<8xf32> to vector<8x1xf32>
      %cst_44 = arith.constant 0.00392156886 : f32
      %108 = vector.broadcast %cst_44 : f32 to vector<8x1xf32>
      %109 = arith.mulf %107, %108 : vector<8x1xf32>
      %110 = math.sqrt %109 : vector<8x1xf32>
      %cst_45 = arith.constant 9.99999997E-7 : f32
      %111 = vector.broadcast %cst_45 : f32 to vector<8x1xf32>
      %112 = arith.addf %110, %111 : vector<8x1xf32>
      %113 = tpu.reciprocal %112 : vector<8x1xf32> -> vector<8x1xf32>
      %114 = vector.broadcast %97 : vector<1x256xf32> to vector<8x256xf32>
      %115 = arith.mulf %114, %104 : vector<8x256xf32>
      %116 = vector.broadcast %113 : vector<8x1xf32> to vector<8x256xf32>
      %117 = arith.mulf %115, %116 : vector<8x256xf32>
      %118 = vector.broadcast %98 : vector<1x256xf32> to vector<8x256xf32>
      %119 = arith.addf %117, %118 : vector<8x256xf32>
      %120 = vector.shape_cast %119 : vector<8x256xf32> to vector<1x8x256xf32>
      %c0_46 = arith.constant 0 : index
      %c0_47 = arith.constant 0 : index
      %c0_48 = arith.constant 0 : index
      %121 = vector.load %arg11[%c0_46, %c0_47, %c0_48] : memref<1x8x256xf32, #tpu.memory_space<vmem>>, vector<1x8x256xf32>
      tpu.vector_store %arg11[%c0_46, %c0_47, %c0_48], %120 {strides = array<i32>} : memref<1x8x256xf32, #tpu.memory_space<vmem>>, vector<1x8x256xf32>,
    } else {
    }
    return
  }
  func.func @transform_0(%arg0: i32, %arg1: i32) -> (i32, i32, i32) {
    %c0_i32 = arith.constant 0 : i32
    %c0_i32_0 = arith.constant 0 : i32
    %c0_i32_1 = arith.constant 0 : i32
    return %arg0, %c0_i32, %c0_i32_0 : i32, i32, i32
  }
  func.func @transform_1(%arg0: i32, %arg1: i32) -> (i32, i32, i32) {
    %c0_i32 = arith.constant 0 : i32
    %c0_i32_0 = arith.constant 0 : i32
    %c0_i32_1 = arith.constant 0 : i32
    return %arg0, %c0_i32, %c0_i32_0 : i32, i32, i32
  }
  func.func @transform_2(%arg0: i32, %arg1: i32) -> (i32, i32, i32) {
    %c0_i32 = arith.constant 0 : i32
    %c0_i32_0 = arith.constant 0 : i32
    %c0_i32_1 = arith.constant 0 : i32
    return %arg1, %c0_i32, %c0_i32_0 : i32, i32, i32
  }
  func.func @transform_3(%arg0: i32, %arg1: i32) -> (i32, i32, i32) {
    %c0_i32 = arith.constant 0 : i32
    %c0_i32_0 = arith.constant 0 : i32
    %c0_i32_1 = arith.constant 0 : i32
    return %arg1, %c0_i32, %c0_i32_0 : i32, i32, i32
  }
  func.func @transform_4(%arg0: i32, %arg1: i32) -> (i32, i32, i32) {
    %c0_i32 = arith.constant 0 : i32
    %c0_i32_0 = arith.constant 0 : i32
    %c0_i32_1 = arith.constant 0 : i32
    return %arg1, %c0_i32, %c0_i32_0 : i32, i32, i32
  }
  func.func @transform_5(%arg0: i32, %arg1: i32) -> (i32, i32, i32) {
    %c0_i32 = arith.constant 0 : i32
    %c0_i32_0 = arith.constant 0 : i32
    %c0_i32_1 = arith.constant 0 : i32
    return %arg1, %c0_i32, %c0_i32_0 : i32, i32, i32
  }
  func.func @transform_6(%arg0: i32, %arg1: i32) -> (i32, i32, i32) {
    %c0_i32 = arith.constant 0 : i32
    %c0_i32_0 = arith.constant 0 : i32
    %c0_i32_1 = arith.constant 0 : i32
    return %arg1, %c0_i32, %c0_i32_0 : i32, i32, i32
  }
  func.func @transform_7(%arg0: i32, %arg1: i32) -> (i32, i32) {
    %c0_i32 = arith.constant 0 : i32
    %c0_i32_0 = arith.constant 0 : i32
    %c0_i32_1 = arith.constant 0 : i32
    return %c0_i32, %c0_i32_0 : i32, i32
  }
  func.func @transform_8(%arg0: i32, %arg1: i32) -> (i32, i32) {
    %c0_i32 = arith.constant 0 : i32
    %c0_i32_0 = arith.constant 0 : i32
    %c0_i32_1 = arith.constant 0 : i32
    return %c0_i32, %c0_i32_0 : i32, i32
  }
  func.func @transform_9(%arg0: i32, %arg1: i32) -> (i32, i32, i32) {
    %c0_i32 = arith.constant 0 : i32
    %c0_i32_0 = arith.constant 0 : i32
    %c0_i32_1 = arith.constant 0 : i32
    return %arg0, %c0_i32, %c0_i32_0 : i32, i32, i32
  }
}

</mosaic_0001>

<llo_original>
// kernel: aoa_refiner_core.1
$region0: #{aoa_refiner_core.1}
  #allocation0 [shape = 'u32[]', space=smem, size = 0x4, offset = 0x4, fixed_abs, tag = 'smem constant byte address 0x4 - core index']
  #allocation1 [shape = 'u32[144,128]{1,0:T(1,128)}', space=vmem, size = 0x12000, scoped, tag = 'internal scratch']
  #allocation2 [shape = 'f32[8,256]{1,0:T(8,128)}', space=vmem, size = 0x2000, scoped, tag = 'scratch operand']
  %s0 = inlined_call_operand.vmem [shape: f32[2,8,256], index: 0, kind: input, shape index: {}]
  %s1 = inlined_call_operand.vmem [shape: f32[2,1,8], index: 1, kind: input, shape index: {}]
  %s2 = inlined_call_operand.vmem [shape: f32[6,256,1280], index: 2, kind: input, shape index: {}]
  %s3 = inlined_call_operand.vmem [shape: f32[6,1,1280], index: 3, kind: input, shape index: {}]
  %s4 = inlined_call_operand.vmem [shape: f32[6,256,512], index: 4, kind: input, shape index: {}]
  %s5 = inlined_call_operand.vmem [shape: f32[6,1,256], index: 5, kind: input, shape index: {}]
  %s6 = inlined_call_operand.vmem [shape: f32[6,1,256], index: 6, kind: input, shape index: {}]
  %s7 = inlined_call_operand.vmem [shape: f32[1,256], index: 7, kind: input, shape index: {}]
  %s8 = inlined_call_operand.vmem [shape: f32[1,256], index: 8, kind: input, shape index: {}]
  %s9 = inlined_call_operand.hbm [shape: f32[2,8,256], index: 9, kind: output, shape index: {}]
  %s10 = sld [smem:[#allocation0]]
  $region77: #{aoa_refiner_core.1} parent=0
    _
  %s12 = ssub.s32 1, %s10
  %s13 = scalar_select 0, %s12, %s10
  $region1: #{aoa_refiner_core.1} parent=0
    #allocation3 [shape = 'u8[16384]{0}', space=vmem, size = 0x4000, scoped, tag = 'output window, operand 0']
    #allocation4 [shape = 's32[2]{0}', space=sflag, size = 0x8, scoped, tag = 'scoped memory for aoa_refiner_core.1']
    %14 = vsyncpa [#allocation4], 0
    %s15 = scalar_lea.sflag [#allocation4], 1
    %16 = vsyncpa %s15, 0
    loop: start=0, step=1, limit=14
    $region2: #{aoa_refiner_core.1} parent=1 // loop_pre_header
      _
    $region3: #{aoa_refiner_core.1} parent=1 // loop_header
      %s18 = sphi 0, %s22
      %p19 = scmp.ge.s32.totalorder %s18, 14
      %s25 = sphi 0, %s37
      %s26 = sphi 0, %s33
      %s27 = sphi 0, %s25
      %s28 = sphi 0, %s26
      %s29 = sphi 0, %s27
      %s30 = sphi 0, %s28
      %s40 = sphi 0, %s42
      %s43 = sphi 0, %s40
      %s44 = sphi 0, %s43
      %s60 = sphi 0, %s44
      %s66 = sphi 0, %s68
      %s69 = sphi 0, %s66
      %s70 = sphi 0, %s69
      %s86 = sphi 0, %s70
      %s92 = sphi 0, %s94
      %s95 = sphi 0, %s92
      %s96 = sphi 0, %s95
      %s112 = sphi 0, %s96
      %s118 = sphi 0, %s120
      %s121 = sphi 0, %s118
      %s122 = sphi 0, %s121
      %s138 = sphi 0, %s122
      %s144 = sphi 0, %s146
      %s147 = sphi 0, %s144
      %s148 = sphi 0, %s147
      %s164 = sphi 0, %s148
      %s170 = sphi 0, %s172
      %s173 = sphi 0, %s170
      %s174 = sphi 0, %s173
      %s190 = sphi 0, %s174
      %s196 = sphi 0, %s198
      %s199 = sphi 0, %s196
      %s200 = sphi 0, %s199
      %s216 = sphi 0, %s200
      %s220 = sphi 0, %s220
      %s222 = sphi 0, %s220
      %s223 = sphi 0, %s222
      %s237 = sphi 0, %s223
      %s241 = sphi 0, %s241
      %s243 = sphi 0, %s241
      %s244 = sphi 0, %s243
      %s258 = sphi 0, %s244
      %s264 = sphi 0, %s266
      %s267 = sphi 0, %s264
      %s268 = sphi 0, %s267
      %s284 = sphi 0, %s268
    $region4: #{aoa_refiner_core.1} parent=1 // loop_header_branch
      %21 = sbr.rel (%p19) target = $region8
    $region5: #{aoa_refiner_core.1} parent=1 // loop_body
      %s23 = ssub.s32 %s18, 1
      %s24 = ssub.s32 %s18, 2
      %s31 = sadd.s32 1, %s26
      %p32 = scmp.ge.s32.totalorder %s31, 6
      %s33 = scalar_select %p32, 0, %s31
      %s34 = sadd.s32 1, %s25
      %s35 = scalar_select %p32, %s34, %s25
      %p36 = scmp.ge.s32.totalorder %s35, 2
      %s37 = scalar_select %p36, 0, %s35
      %s38 = ssub.s32 %s25, %s37
      %p39 = scmp.eq.s32.totalorder %s38, 0
      %s41 = sadd.s32 %s40, 1
      %s42 = scalar_select %p39, %s40, %s41
      %p45 = pneg %p39
      %p46 = scmp.eq.s32.totalorder %s18, 11
      %p47 = por %p45, %p46
      %p48 = scmp.ne.s32.totalorder %s40, %s43
      %p49 = scmp.eq.s32.totalorder %s18, 0
      %p50 = por %p48, %p49
      %p51 = scmp.ne.s32.totalorder %s40, %s43
      %p52 = scmp.eq.s32.totalorder %s23, 11
      %p53 = por %p51, %p52
      %p54 = scmp.ne.s32.totalorder %s43, %s44
      %p55 = scmp.eq.s32.totalorder %s23, 0
      %p56 = por %p54, %p55
      %p57 = scmp.ne.s32.totalorder %s43, %s44
      %p58 = scmp.eq.s32.totalorder %s24, 11
      %p59 = por %p57, %p58
      %p61 = scmp.ne.s32.totalorder %s44, %s60
      %p62 = scmp.eq.s32.totalorder %s24, 0
      %p63 = por %p61, %p62
      %s64 = ssub.s32 %s25, %s37
      %p65 = scmp.eq.s32.totalorder %s64, 0
      %s67 = sadd.s32 %s66, 1
      %s68 = scalar_select %p65, %s66, %s67
      %p71 = pneg %p65
      %p72 = scmp.eq.s32.totalorder %s18, 11
      %p73 = por %p71, %p72
      %p74 = scmp.ne.s32.totalorder %s66, %s69
      %p75 = scmp.eq.s32.totalorder %s18, 0
      %p76 = por %p74, %p75
      %p77 = scmp.ne.s32.totalorder %s66, %s69
      %p78 = scmp.eq.s32.totalorder %s23, 11
      %p79 = por %p77, %p78
      %p80 = scmp.ne.s32.totalorder %s69, %s70
      %p81 = scmp.eq.s32.totalorder %s23, 0
      %p82 = por %p80, %p81
      %p83 = scmp.ne.s32.totalorder %s69, %s70
      %p84 = scmp.eq.s32.totalorder %s24, 11
      %p85 = por %p83, %p84
      %p87 = scmp.ne.s32.totalorder %s70, %s86
      %p88 = scmp.eq.s32.totalorder %s24, 0
      %p89 = por %p87, %p88
      %s90 = ssub.s32 %s26, %s33
      %p91 = scmp.eq.s32.totalorder %s90, 0
      %s93 = sadd.s32 %s92, 1
      %s94 = scalar_select %p91, %s92, %s93
      %p97 = pneg %p91
      %p98 = scmp.eq.s32.totalorder %s18, 11
      %p99 = por %p97, %p98
      %p100 = scmp.ne.s32.totalorder %s92, %s95
      %p101 = scmp.eq.s32.totalorder %s18, 0
      %p102 = por %p100, %p101
      %p103 = scmp.ne.s32.totalorder %s92, %s95
      %p104 = scmp.eq.s32.totalorder %s23, 11
      %p105 = por %p103, %p104
      %p106 = scmp.ne.s32.totalorder %s95, %s96
      %p107 = scmp.eq.s32.totalorder %s23, 0
      %p108 = por %p106, %p107
      %p109 = scmp.ne.s32.totalorder %s95, %s96
      %p110 = scmp.eq.s32.totalorder %s24, 11
      %p111 = por %p109, %p110
      %p113 = scmp.ne.s32.totalorder %s96, %s112
      %p114 = scmp.eq.s32.totalorder %s24, 0
      %p115 = por %p113, %p114
      %s116 = ssub.s32 %s26, %s33
      %p117 = scmp.eq.s32.totalorder %s116, 0
      %s119 = sadd.s32 %s118, 1
      %s120 = scalar_select %p117, %s118, %s119
      %p123 = pneg %p117
      %p124 = scmp.eq.s32.totalorder %s18, 11
      %p125 = por %p123, %p124
      %p126 = scmp.ne.s32.totalorder %s118, %s121
      %p127 = scmp.eq.s32.totalorder %s18, 0
      %p128 = por %p126, %p127
      %p129 = scmp.ne.s32.totalorder %s118, %s121
      %p130 = scmp.eq.s32.totalorder %s23, 11
      %p131 = por %p129, %p130
      %p132 = scmp.ne.s32.totalorder %s121, %s122
      %p133 = scmp.eq.s32.totalorder %s23, 0
      %p134 = por %p132, %p133
      %p135 = scmp.ne.s32.totalorder %s121, %s122
      %p136 = scmp.eq.s32.totalorder %s24, 11
      %p137 = por %p135, %p136
      %p139 = scmp.ne.s32.totalorder %s122, %s138
      %p140 = scmp.eq.s32.totalorder %s24, 0
      %p141 = por %p139, %p140
      %s142 = ssub.s32 %s26, %s33
      %p143 = scmp.eq.s32.totalorder %s142, 0
      %s145 = sadd.s32 %s144, 1
      %s146 = scalar_select %p143, %s144, %s145
      %p149 = pneg %p143
      %p150 = scmp.eq.s32.totalorder %s18, 11
      %p151 = por %p149, %p150
      %p152 = scmp.ne.s32.totalorder %s144, %s147
      %p153 = scmp.eq.s32.totalorder %s18, 0
      %p154 = por %p152, %p153
      %p155 = scmp.ne.s32.totalorder %s144, %s147
      %p156 = scmp.eq.s32.totalorder %s23, 11
      %p157 = por %p155, %p156
      %p158 = scmp.ne.s32.totalorder %s147, %s148
      %p159 = scmp.eq.s32.totalorder %s23, 0
      %p160 = por %p158, %p159
      %p161 = scmp.ne.s32.totalorder %s147, %s148
      %p162 = scmp.eq.s32.totalorder %s24, 11
      %p163 = por %p161, %p162
      %p165 = scmp.ne.s32.totalorder %s148, %s164
      %p166 = scmp.eq.s32.totalorder %s24, 0
      %p167 = por %p165, %p166
      %s168 = ssub.s32 %s26, %s33
      %p169 = scmp.eq.s32.totalorder %s168, 0
      %s171 = sadd.s32 %s170, 1
      %s172 = scalar_select %p169, %s170, %s171
      %p175 = pneg %p169
      %p176 = scmp.eq.s32.totalorder %s18, 11
      %p177 = por %p175, %p176
      %p178 = scmp.ne.s32.totalorder %s170, %s173
      %p179 = scmp.eq.s32.totalorder %s18, 0
      %p180 = por %p178, %p179
      %p181 = scmp.ne.s32.totalorder %s170, %s173
      %p182 = scmp.eq.s32.totalorder %s23, 11
      %p183 = por %p181, %p182
      %p184 = scmp.ne.s32.totalorder %s173, %s174
      %p185 = scmp.eq.s32.totalorder %s23, 0
      %p186 = por %p184, %p185
      %p187 = scmp.ne.s32.totalorder %s173, %s174
      %p188 = scmp.eq.s32.totalorder %s24, 11
      %p189 = por %p187, %p188
      %p191 = scmp.ne.s32.totalorder %s174, %s190
      %p192 = scmp.eq.s32.totalorder %s24, 0
      %p193 = por %p191, %p192
      %s194 = ssub.s32 %s26, %s33
      %p195 = scmp.eq.s32.totalorder %s194, 0
      %s197 = sadd.s32 %s196, 1
      %s198 = scalar_select %p195, %s196, %s197
      %p201 = pneg %p195
      %p202 = scmp.eq.s32.totalorder %s18, 11
      %p203 = por %p201, %p202
      %p204 = scmp.ne.s32.totalorder %s196, %s199
      %p205 = scmp.eq.s32.totalorder %s18, 0
      %p206 = por %p204, %p205
      %p207 = scmp.ne.s32.totalorder %s196, %s199
      %p208 = scmp.eq.s32.totalorder %s23, 11
      %p209 = por %p207, %p208
      %p210 = scmp.ne.s32.totalorder %s199, %s200
      %p211 = scmp.eq.s32.totalorder %s23, 0
      %p212 = por %p210, %p211
      %p213 = scmp.ne.s32.totalorder %s199, %s200
      %p214 = scmp.eq.s32.totalorder %s24, 11
      %p215 = por %p213, %p214
      %p217 = scmp.ne.s32.totalorder %s200, %s216
      %p218 = scmp.eq.s32.totalorder %s24, 0
      %p219 = por %p217, %p218
      %s221 = sadd.s32 %s220, 1
      %p224 = scmp.eq.s32.totalorder %s18, 11
      %p225 = scmp.ne.s32.totalorder %s220, %s222
      %p226 = scmp.eq.s32.totalorder %s18, 0
      %p227 = por %p225, %p226
      %p228 = scmp.ne.s32.totalorder %s220, %s222
      %p229 = scmp.eq.s32.totalorder %s23, 11
      %p230 = por %p228, %p229
      %p231 = scmp.ne.s32.totalorder %s222, %s223
      %p232 = scmp.eq.s32.totalorder %s23, 0
      %p233 = por %p231, %p232
      %p234 = scmp.ne.s32.totalorder %s222, %s223
      %p235 = scmp.eq.s32.totalorder %s24, 11
      %p236 = por %p234, %p235
      %p238 = scmp.ne.s32.totalorder %s223, %s237
      %p239 = scmp.eq.s32.totalorder %s24, 0
      %p240 = por %p238, %p239
      %s242 = sadd.s32 %s241, 1
      %p245 = scmp.eq.s32.totalorder %s18, 11
      %p246 = scmp.ne.s32.totalorder %s241, %s243
      %p247 = scmp.eq.s32.totalorder %s18, 0
      %p248 = por %p246, %p247
      %p249 = scmp.ne.s32.totalorder %s241, %s243
      %p250 = scmp.eq.s32.totalorder %s23, 11
      %p251 = por %p249, %p250
      %p252 = scmp.ne.s32.totalorder %s243, %s244
      %p253 = scmp.eq.s32.totalorder %s23, 0
      %p254 = por %p252, %p253
      %p255 = scmp.ne.s32.totalorder %s243, %s244
      %p256 = scmp.eq.s32.totalorder %s24, 11
      %p257 = por %p255, %p256
      %p259 = scmp.ne.s32.totalorder %s244, %s258
      %p260 = scmp.eq.s32.totalorder %s24, 0
      %p261 = por %p259, %p260
      %s262 = ssub.s32 %s25, %s37
      %p263 = scmp.eq.s32.totalorder %s262, 0
      %s265 = sadd.s32 %s264, 1
      %s266 = scalar_select %p263, %s264, %s265
      %p269 = pneg %p263
      %p270 = scmp.eq.s32.totalorder %s18, 11
      %p271 = por %p269, %p270
      %p272 = scmp.ne.s32.totalorder %s264, %s267
      %p273 = scmp.eq.s32.totalorder %s18, 0
      %p274 = por %p272, %p273
      %p275 = scmp.ne.s32.totalorder %s264, %s267
      %p276 = scmp.eq.s32.totalorder %s23, 11
      %p277 = por %p275, %p276
      %p278 = scmp.ne.s32.totalorder %s267, %s268
      %p279 = scmp.eq.s32.totalorder %s23, 0
      %p280 = por %p278, %p279
      %p281 = scmp.ne.s32.totalorder %s267, %s268
      %p282 = scmp.eq.s32.totalorder %s24, 11
      %p283 = por %p281, %p282
      %p285 = scmp.ne.s32.totalorder %s268, %s284
      %p286 = scmp.eq.s32.totalorder %s24, 0
      %p287 = por %p285, %p286
      %p288 = scmp.le.s32.totalorder 1, %s18
      %p289 = scmp.lt.s32.totalorder %s18, 13
      %p290 = pnand %p288, %p289
      %p291 = pneg %p290
      // Predicated region
      $region9: #{aoa_refiner_core.1} parent=5 // pred_check
        _
      $region10: #{aoa_refiner_core.1} parent=5 // pred_check_branch
        %293 = sbr.rel (%p290) target = $region12
      $region11: #{aoa_refiner_core.1} parent=5 // pred_region
        %s294 = ssub.s32 %s18, 1
        // Predicated region
        $region13: #{aoa_refiner_core.1} parent=11 // pred_check
          %p295 = pneg %p233
        $region14: #{aoa_refiner_core.1} parent=11 // pred_check_branch
          %297 = sbr.rel (%p295) target = $region16
        $region15: #{aoa_refiner_core.1} parent=11 // pred_region
          _
        $region16: #{aoa_refiner_core.1} parent=11 // pred_fallthru
          _
        // Predicated region
        $region17: #{aoa_refiner_core.1} parent=11 // pred_check
          %p298 = pneg %p254
        $region18: #{aoa_refiner_core.1} parent=11 // pred_check_branch
          %300 = sbr.rel (%p298) target = $region20
        $region19: #{aoa_refiner_core.1} parent=11 // pred_region
          _
        $region20: #{aoa_refiner_core.1} parent=11 // pred_fallthru
          _
      $region12: #{aoa_refiner_core.1} parent=5 // pred_fallthru
        _
      %p301 = scmp.lt.s32.totalorder %s18, 12
      // Predicated region
      $region21: #{aoa_refiner_core.1} parent=5 // pred_check
        %p302 = pneg %p301
      $region22: #{aoa_refiner_core.1} parent=5 // pred_check_branch
        %304 = sbr.rel (%p302) target = $region24
      $region23: #{aoa_refiner_core.1} parent=5 // pred_region
        // Predicated region
        $region25: #{aoa_refiner_core.1} parent=23 // pred_check
          %p305 = pneg %p50
        $region26: #{aoa_refiner_core.1} parent=23 // pred_check_branch
          %307 = sbr.rel (%p305) target = $region28
        $region27: #{aoa_refiner_core.1} parent=23 // pred_region
          %p308 = scmp.lt.s32.totalorder %s25, 1
          %s309 = scalar_select %p308, %s25, 1
          %s310 = smul.addr %s309, 2
          %s311 = smul.addr %s310, 8
          %s312 = scalar_lea.vmem %s0, %s311
        $region28: #{aoa_refiner_core.1} parent=23 // pred_fallthru
          _
        // Predicated region
        $region29: #{aoa_refiner_core.1} parent=23 // pred_check
          %p313 = pneg %p76
        $region30: #{aoa_refiner_core.1} parent=23 // pred_check_branch
          %315 = sbr.rel (%p313) target = $region32
        $region31: #{aoa_refiner_core.1} parent=23 // pred_region
          %p316 = scmp.lt.s32.totalorder %s25, 1
          %s317 = scalar_select %p316, %s25, 1
          %s318 = scalar_lea.vmem %s1, %s317
        $region32: #{aoa_refiner_core.1} parent=23 // pred_fallthru
          _
        // Predicated region
        $region33: #{aoa_refiner_core.1} parent=23 // pred_check
          %p319 = pneg %p102
        $region34: #{aoa_refiner_core.1} parent=23 // pred_check_branch
          %321 = sbr.rel (%p319) target = $region36
        $region35: #{aoa_refiner_core.1} parent=23 // pred_region
          %p322 = scmp.lt.s32.totalorder %s26, 5
          %s323 = scalar_select %p322, %s26, 5
          %s324 = smul.addr %s323, 320
          %s325 = smul.addr %s324, 8
          %s326 = scalar_lea.vmem %s2, %s325
        $region36: #{aoa_refiner_core.1} parent=23 // pred_fallthru
          _
        // Predicated region
        $region37: #{aoa_refiner_core.1} parent=23 // pred_check
          %p327 = pneg %p128
        $region38: #{aoa_refiner_core.1} parent=23 // pred_check_branch
          %329 = sbr.rel (%p327) target = $region40
        $region39: #{aoa_refiner_core.1} parent=23 // pred_region
          %p330 = scmp.lt.s32.totalorder %s26, 5
          %s331 = scalar_select %p330, %s26, 5
          %s332 = smul.addr %s331, 10
          %s333 = scalar_lea.vmem %s3, %s332
        $region40: #{aoa_refiner_core.1} parent=23 // pred_fallthru
          _
        // Predicated region
        $region41: #{aoa_refiner_core.1} parent=23 // pred_check
          %p334 = pneg %p154
        $region42: #{aoa_refiner_core.1} parent=23 // pred_check_branch
          %336 = sbr.rel (%p334) target = $region44
        $region43: #{aoa_refiner_core.1} parent=23 // pred_region
          %p337 = scmp.lt.s32.totalorder %s26, 5
          %s338 = scalar_select %p337, %s26, 5
          %s339 = smul.addr %s338, 128
          %s340 = smul.addr %s339, 8
          %s341 = scalar_lea.vmem %s4, %s340
        $region44: #{aoa_refiner_core.1} parent=23 // pred_fallthru
          _
        // Predicated region
        $region45: #{aoa_refiner_core.1} parent=23 // pred_check
          %p342 = pneg %p180
        $region46: #{aoa_refiner_core.1} parent=23 // pred_check_branch
          %344 = sbr.rel (%p342) target = $region48
        $region47: #{aoa_refiner_core.1} parent=23 // pred_region
          %p345 = scmp.lt.s32.totalorder %s26, 5
          %s346 = scalar_select %p345, %s26, 5
          %s347 = smul.addr %s346, 2
          %s348 = scalar_lea.vmem %s5, %s347
        $region48: #{aoa_refiner_core.1} parent=23 // pred_fallthru
          _
        // Predicated region
        $region49: #{aoa_refiner_core.1} parent=23 // pred_check
          %p349 = pneg %p206
        $region50: #{aoa_refiner_core.1} parent=23 // pred_check_branch
          %351 = sbr.rel (%p349) target = $region52
        $region51: #{aoa_refiner_core.1} parent=23 // pred_region
          %p352 = scmp.lt.s32.totalorder %s26, 5
          %s353 = scalar_select %p352, %s26, 5
          %s354 = smul.addr %s353, 2
          %s355 = scalar_lea.vmem %s6, %s354
        $region52: #{aoa_refiner_core.1} parent=23 // pred_fallthru
          _
      $region24: #{aoa_refiner_core.1} parent=5 // pred_fallthru
        _
      %p356 = scmp.le.s32.totalorder 1, %s18
      %p357 = scmp.lt.s32.totalorder %s18, 13
      %p358 = pnand %p356, %p357
      %p359 = pneg %p358
      // Predicated region
      $region53: #{aoa_refiner_core.1} parent=5 // pred_check
        _
      $region54: #{aoa_refiner_core.1} parent=5 // pred_check_branch
        %361 = sbr.rel (%p358) target = $region56
      $region55: #{aoa_refiner_core.1} parent=5 // pred_region
        %s362 = ssub.s32 %s18, 1
        %p363 = scmp.lt.s32.totalorder %s27, 1
        %s364 = scalar_select %p363, %s27, 1
        %s365 = smul.addr %s364, 2
        %s366 = smul.addr %s365, 8
        %s367 = scalar_lea.vmem %s0, %s366
        %p368 = pneg %p56
        %p369 = pneg %p53
        %p370 = scmp.lt.s32.totalorder %s27, 1
        %s371 = scalar_select %p370, %s27, 1
        %s372 = scalar_lea.vmem %s1, %s371
        %p373 = pneg %p82
        %p374 = pneg %p79
        %p375 = scmp.lt.s32.totalorder %s28, 5
        %s376 = scalar_select %p375, %s28, 5
        %s377 = smul.addr %s376, 320
        %s378 = smul.addr %s377, 8
        %s379 = scalar_lea.vmem %s2, %s378
        %p380 = pneg %p108
        %p381 = pneg %p105
        %p382 = scmp.lt.s32.totalorder %s28, 5
        %s383 = scalar_select %p382, %s28, 5
        %s384 = smul.addr %s383, 10
        %s385 = scalar_lea.vmem %s3, %s384
        %p386 = pneg %p134
        %p387 = pneg %p131
        %p388 = scmp.lt.s32.totalorder %s28, 5
        %s389 = scalar_select %p388, %s28, 5
        %s390 = smul.addr %s389, 128
        %s391 = smul.addr %s390, 8
        %s392 = scalar_lea.vmem %s4, %s391
        %p393 = pneg %p160
        %p394 = pneg %p157
        %p395 = scmp.lt.s32.totalorder %s28, 5
        %s396 = scalar_select %p395, %s28, 5
        %s397 = smul.addr %s396, 2
        %s398 = scalar_lea.vmem %s5, %s397
        %p399 = pneg %p186
        %p400 = pneg %p183
        %p401 = scmp.lt.s32.totalorder %s28, 5
        %s402 = scalar_select %p401, %s28, 5
        %s403 = smul.addr %s402, 2
        %s404 = scalar_lea.vmem %s6, %s403
        %p405 = pneg %p212
        %p406 = pneg %p209
        %p407 = pneg %p233
        %p408 = pneg %p230
        %p409 = pneg %p254
        %p410 = pneg %p251
        %p411 = pneg %p280
        %p412 = pneg %p277
        %s413 = sand.u32 %s267, 1
        %s414 = scalar_lea.sflag [#allocation4], %s413
        %s415 = sand.u32 %s267, 1
        %s416 = smul.addr %s415, 16
        %s417 = scalar_lea.vmem [#allocation3], %s416
        %p418 = scmp.lt.s32.totalorder %s27, 1
        %s419 = scalar_select %p418, %s27, 1
        %s420 = smul.addr %s419, 2
        %s421 = smul.addr %s420, 8
        %s422 = scalar_lea.vmem %s0, %s421
        %p423 = scmp.lt.s32.totalorder %s27, 1
        %s424 = scalar_select %p423, %s27, 1
        %s425 = scalar_lea.vmem %s1, %s424
        %p426 = scmp.lt.s32.totalorder %s28, 5
        %s427 = scalar_select %p426, %s28, 5
        %s428 = smul.addr %s427, 320
        %s429 = smul.addr %s428, 8
        %s430 = scalar_lea.vmem %s2, %s429
        %p431 = scmp.lt.s32.totalorder %s28, 5
        %s432 = scalar_select %p431, %s28, 5
        %s433 = smul.addr %s432, 10
        %s434 = scalar_lea.vmem %s3, %s433
        %p435 = scmp.lt.s32.totalorder %s28, 5
        %s436 = scalar_select %p435, %s28, 5
        %s437 = smul.addr %s436, 128
        %s438 = smul.addr %s437, 8
        %s439 = scalar_lea.vmem %s4, %s438
        %p440 = scmp.lt.s32.totalorder %s28, 5
        %s441 = scalar_select %p440, %s28, 5
        %s442 = smul.addr %s441, 2
        %s443 = scalar_lea.vmem %s5, %s442
        %p444 = scmp.lt.s32.totalorder %s28, 5
        %s445 = scalar_select %p444, %s28, 5
        %s446 = smul.addr %s445, 2
        %s447 = scalar_lea.vmem %s6, %s446
        %p448 = scmp.eq.s32.totalorder %s28, 0
        // Predicated region
        $region57: #{aoa_refiner_core.1} parent=55 // pred_check
          %p449 = pneg %p448
        $region58: #{aoa_refiner_core.1} parent=55 // pred_check_branch
          %451 = sbr.rel (%p449) target = $region60
        $region59: #{aoa_refiner_core.1} parent=55 // pred_region
          %v452 = vld [vmem:[%s422] sm:$0xff]
          %v453 = vld [vmem:[%s422 + $0x8] sm:$0xff]
          %454 = vst [vmem:[#allocation2] sm:$0xff] %v452
          %455 = vst [vmem:[#allocation2 + $0x8] sm:$0xff] %v453
        $region60: #{aoa_refiner_core.1} parent=55 // pred_fallthru
          _
        %v456 = vld [vmem:[#allocation2] sm:$0xff]
        %v457 = vld [vmem:[#allocation2 + $0x8] sm:$0xff]
        %v458 = vld [vmem:[%s443] sm:$0x3]
        %v459 = vld [vmem:[%s447] sm:$0x3]
        %v460 = vadd.f32 %v456, %v457
        %461 = vadd.xlane.f32.xlu0 %v460
        %v462 = vpop.xlane.xlu0 %461
        %v463 = vrcp.pop 256.0
        %v464 = vmul.f32 %v462, %v463
        %v465 = vsub.f32 %v456, %v464
        %v466 = vsub.f32 %v457, %v464
        %v467 = vmul.f32 %v465, %v465
        %v468 = vmul.f32 %v466, %v466
        %v469 = vadd.f32 %v467, %v468
        %470 = vadd.xlane.f32.xlu0 %v469
        %v471 = vpop.xlane.xlu0 %470
        %v472 = vmul.f32 %v471, 0.003921569
        %v473 = vrsqrt.pop %v472
        %v474 = vmul.f32 %v472, %v473
        %vm475 = vcmp.eq.f32.partialorder %v472, inf
        %v476 = vsel %vm475, %v472, %v474
        %vm477 = vcmp.eq.f32.partialorder %v472, 0.0
        %v478 = vand.u32 %v472, 2147483648
        %v479 = vsel %vm477, %v478, %v476
        %v480 = vadd.f32 %v479, 1e-06
        %v481 = vrcp.pop %v480
        %v483 = vlaneseq
        %v484 = vshrl.u32 %v483, 7
        %v485 = vsub.s32 0, %v484
        %v486 = vrot.slane %v458, %v485
        %v487 = vlaneseq
        %v488 = vshrl.u32 %v487, 7
        %v489 = vsub.s32 1, %v488
        %v490 = vrot.slane %v458, %v489
        %v493 = vmul.f32 %v486, %v465
        %v494 = vmul.f32 %v490, %v466
        %v495 = vmul.f32 %v493, %v481
        %v496 = vmul.f32 %v494, %v481
        %v498 = vlaneseq
        %v499 = vshrl.u32 %v498, 7
        %v500 = vsub.s32 0, %v499
        %v501 = vrot.slane %v459, %v500
        %v502 = vlaneseq
        %v503 = vshrl.u32 %v502, 7
        %v504 = vsub.s32 1, %v503
        %v505 = vrot.slane %v459, %v504
        %v508 = vadd.f32 %v495, %v501
        %v509 = vadd.f32 %v496, %v505
        %v510 = vld [vmem:[%s430] sm:$0xff]
        %v511 = vld [vmem:[%s430 + $0x8] sm:$0xff]
        %v512 = vld [vmem:[%s430 + $0x10] sm:$0xff]
        %v513 = vld [vmem:[%s430 + $0x18] sm:$0xff]
        %v514 = vld [vmem:[%s430 + $0x20] sm:$0xff]
        %v515 = vld [vmem:[%s430 + $0x28] sm:$0xff]
        %v516 = vld [vmem:[%s430 + $0x30] sm:$0xff]
        %v517 = vld [vmem:[%s430 + $0x38] sm:$0xff]
        %v518 = vld [vmem:[%s430 + $0x40] sm:$0xff]
        %v519 = vld [vmem:[%s430 + $0x48] sm:$0xff]
        %v520 = vld [vmem:[%s430 + $0x50] sm:$0xff]
        %v521 = vld [vmem:[%s430 + $0x58] sm:$0xff]
        %v522 = vld [vmem:[%s430 + $0x60] sm:$0xff]
        %v523 = vld [vmem:[%s430 + $0x68] sm:$0xff]
        %v524 = vld [vmem:[%s430 + $0x70] sm:$0xff]
        %v525 = vld [vmem:[%s430 + $0x78] sm:$0xff]
        %v526 = vld [vmem:[%s430 + $0x80] sm:$0xff]
        %v527 = vld [vmem:[%s430 + $0x88] sm:$0xff]
        %v528 = vld [vmem:[%s430 + $0x90] sm:$0xff]
        %v529 = vld [vmem:[%s430 + $0x98] sm:$0xff]
        %v530 = vld [vmem:[%s430 + $0xa0] sm:$0xff]
        %v531 = vld [vmem:[%s430 + $0xa8] sm:$0xff]
        %v532 = vld [vmem:[%s430 + $0xb0] sm:$0xff]
        %v533 = vld [vmem:[%s430 + $0xb8] sm:$0xff]
        %v534 = vld [vmem:[%s430 + $0xc0] sm:$0xff]
        %v535 = vld [vmem:[%s430 + $0xc8] sm:$0xff]
        %v536 = vld [vmem:[%s430 + $0xd0] sm:$0xff]
        %v537 = vld [vmem:[%s430 + $0xd8] sm:$0xff]
        %v538 = vld [vmem:[%s430 + $0xe0] sm:$0xff]
        %v539 = vld [vmem:[%s430 + $0xe8] sm:$0xff]
        %v540 = vld [vmem:[%s430 + $0xf0] sm:$0xff]
        %v541 = vld [vmem:[%s430 + $0xf8] sm:$0xff]
        %v542 = vld [vmem:[%s430 + $0x100] sm:$0xff]
        %v543 = vld [vmem:[%s430 + $0x108] sm:$0xff]
        %v544 = vld [vmem:[%s430 + $0x110] sm:$0xff]
        %v545 = vld [vmem:[%s430 + $0x118] sm:$0xff]
        %v546 = vld [vmem:[%s430 + $0x120] sm:$0xff]
        %v547 = vld [vmem:[%s430 + $0x128] sm:$0xff]
        %v548 = vld [vmem:[%s430 + $0x130] sm:$0xff]
        %v549 = vld [vmem:[%s430 + $0x138] sm:$0xff]
        %v550 = vld [vmem:[%s430 + $0x140] sm:$0xff]
        %v551 = vld [vmem:[%s430 + $0x148] sm:$0xff]
        %v552 = vld [vmem:[%s430 + $0x150] sm:$0xff]
        %v553 = vld [vmem:[%s430 + $0x158] sm:$0xff]
        %v554 = vld [vmem:[%s430 + $0x160] sm:$0xff]
        %v555 = vld [vmem:[%s430 + $0x168] sm:$0xff]
        %v556 = vld [vmem:[%s430 + $0x170] sm:$0xff]
        %v557 = vld [vmem:[%s430 + $0x178] sm:$0xff]
        %v558 = vld [vmem:[%s430 + $0x180] sm:$0xff]
        %v559 = vld [vmem:[%s430 + $0x188] sm:$0xff]
        %v560 = vld [vmem:[%s430 + $0x190] sm:$0xff]
        %v561 = vld [vmem:[%s430 + $0x198] sm:$0xff]
        %v562 = vld [vmem:[%s430 + $0x1a0] sm:$0xff]
        %v563 = vld [vmem:[%s430 + $0x1a8] sm:$0xff]
        %v564 = vld [vmem:[%s430 + $0x1b0] sm:$0xff]
        %v565 = vld [vmem:[%s430 + $0x1b8] sm:$0xff]
        %v566 = vld [vmem:[%s430 + $0x1c0] sm:$0xff]
        %v567 = vld [vmem:[%s430 + $0x1c8] sm:$0xff]
        %v568 = vld [vmem:[%s430 + $0x1d0] sm:$0xff]
        %v569 = vld [vmem:[%s430 + $0x1d8] sm:$0xff]
        %v570 = vld [vmem:[%s430 + $0x1e0] sm:$0xff]
        %v571 = vld [vmem:[%s430 + $0x1e8] sm:$0xff]
        %v572 = vld [vmem:[%s430 + $0x1f0] sm:$0xff]
        %v573 = vld [vmem:[%s430 + $0x1f8] sm:$0xff]
        %v574 = vld [vmem:[%s430 + $0x200] sm:$0xff]
        %v575 = vld [vmem:[%s430 + $0x208] sm:$0xff]
        %v576 = vld [vmem:[%s430 + $0x210] sm:$0xff]
        %v577 = vld [vmem:[%s430 + $0x218] sm:$0xff]
        %v578 = vld [vmem:[%s430 + $0x220] sm:$0xff]
        %v579 = vld [vmem:[%s430 + $0x228] sm:$0xff]
        %v580 = vld [vmem:[%s430 + $0x230] sm:$0xff]
        %v581 = vld [vmem:[%s430 + $0x238] sm:$0xff]
        %v582 = vld [vmem:[%s430 + $0x240] sm:$0xff]
        %v583 = vld [vmem:[%s430 + $0x248] sm:$0xff]
        %v584 = vld [vmem:[%s430 + $0x250] sm:$0xff]
        %v585 = vld [vmem:[%s430 + $0x258] sm:$0xff]
        %v586 = vld [vmem:[%s430 + $0x260] sm:$0xff]
        %v587 = vld [vmem:[%s430 + $0x268] sm:$0xff]
        %v588 = vld [vmem:[%s430 + $0x270] sm:$0xff]
        %v589 = vld [vmem:[%s430 + $0x278] sm:$0xff]
        %v590 = vld [vmem:[%s430 + $0x280] sm:$0xff]
        %v591 = vld [vmem:[%s430 + $0x288] sm:$0xff]
        %v592 = vld [vmem:[%s430 + $0x290] sm:$0xff]
        %v593 = vld [vmem:[%s430 + $0x298] sm:$0xff]
        %v594 = vld [vmem:[%s430 + $0x2a0] sm:$0xff]
        %v595 = vld [vmem:[%s430 + $0x2a8] sm:$0xff]
        %v596 = vld [vmem:[%s430 + $0x2b0] sm:$0xff]
        %v597 = vld [vmem:[%s430 + $0x2b8] sm:$0xff]
        %v598 = vld [vmem:[%s430 + $0x2c0] sm:$0xff]
        %v599 = vld [vmem:[%s430 + $0x2c8] sm:$0xff]
        %v600 = vld [vmem:[%s430 + $0x2d0] sm:$0xff]
        %v601 = vld [vmem:[%s430 + $0x2d8] sm:$0xff]
        %v602 = vld [vmem:[%s430 + $0x2e0] sm:$0xff]
        %v603 = vld [vmem:[%s430 + $0x2e8] sm:$0xff]
        %v604 = vld [vmem:[%s430 + $0x2f0] sm:$0xff]
        %v605 = vld [vmem:[%s430 + $0x2f8] sm:$0xff]
        %v606 = vld [vmem:[%s430 + $0x300] sm:$0xff]
        %v607 = vld [vmem:[%s430 + $0x308] sm:$0xff]
        %v608 = vld [vmem:[%s430 + $0x310] sm:$0xff]
        %v609 = vld [vmem:[%s430 + $0x318] sm:$0xff]
        %v610 = vld [vmem:[%s430 + $0x320] sm:$0xff]
        %v611 = vld [vmem:[%s430 + $0x328] sm:$0xff]
        %v612 = vld [vmem:[%s430 + $0x330] sm:$0xff]
        %v613 = vld [vmem:[%s430 + $0x338] sm:$0xff]
        %v614 = vld [vmem:[%s430 + $0x340] sm:$0xff]
        %v615 = vld [vmem:[%s430 + $0x348] sm:$0xff]
        %v616 = vld [vmem:[%s430 + $0x350] sm:$0xff]
        %v617 = vld [vmem:[%s430 + $0x358] sm:$0xff]
        %v618 = vld [vmem:[%s430 + $0x360] sm:$0xff]
        %v619 = vld [vmem:[%s430 + $0x368] sm:$0xff]
        %v620 = vld [vmem:[%s430 + $0x370] sm:$0xff]
        %v621 = vld [vmem:[%s430 + $0x378] sm:$0xff]
        %v622 = vld [vmem:[%s430 + $0x380] sm:$0xff]
        %v623 = vld [vmem:[%s430 + $0x388] sm:$0xff]
        %v624 = vld [vmem:[%s430 + $0x390] sm:$0xff]
        %v625 = vld [vmem:[%s430 + $0x398] sm:$0xff]
        %v626 = vld [vmem:[%s430 + $0x3a0] sm:$0xff]
        %v627 = vld [vmem:[%s430 + $0x3a8] sm:$0xff]
        %v628 = vld [vmem:[%s430 + $0x3b0] sm:$0xff]
        %v629 = vld [vmem:[%s430 + $0x3b8] sm:$0xff]
        %v630 = vld [vmem:[%s430 + $0x3c0] sm:$0xff]
        %v631 = vld [vmem:[%s430 + $0x3c8] sm:$0xff]
        %v632 = vld [vmem:[%s430 + $0x3d0] sm:$0xff]
        %v633 = vld [vmem:[%s430 + $0x3d8] sm:$0xff]
        %v634 = vld [vmem:[%s430 + $0x3e0] sm:$0xff]
        %v635 = vld [vmem:[%s430 + $0x3e8] sm:$0xff]
        %v636 = vld [vmem:[%s430 + $0x3f0] sm:$0xff]
        %v637 = vld [vmem:[%s430 + $0x3f8] sm:$0xff]
        %v638 = vld [vmem:[%s430 + $0x400] sm:$0xff]
        %v639 = vld [vmem:[%s430 + $0x408] sm:$0xff]
        %v640 = vld [vmem:[%s430 + $0x410] sm:$0xff]
        %v641 = vld [vmem:[%s430 + $0x418] sm:$0xff]
        %v642 = vld [vmem:[%s430 + $0x420] sm:$0xff]
        %v643 = vld [vmem:[%s430 + $0x428] sm:$0xff]
        %v644 = vld [vmem:[%s430 + $0x430] sm:$0xff]
        %v645 = vld [vmem:[%s430 + $0x438] sm:$0xff]
        %v646 = vld [vmem:[%s430 + $0x440] sm:$0xff]
        %v647 = vld [vmem:[%s430 + $0x448] sm:$0xff]
        %v648 = vld [vmem:[%s430 + $0x450] sm:$0xff]
        %v649 = vld [vmem:[%s430 + $0x458] sm:$0xff]
        %v650 = vld [vmem:[%s430 + $0x460] sm:$0xff]
        %v651 = vld [vmem:[%s430 + $0x468] sm:$0xff]
        %v652 = vld [vmem:[%s430 + $0x470] sm:$0xff]
        %v653 = vld [vmem:[%s430 + $0x478] sm:$0xff]
        %v654 = vld [vmem:[%s430 + $0x480] sm:$0xff]
        %v655 = vld [vmem:[%s430 + $0x488] sm:$0xff]
        %v656 = vld [vmem:[%s430 + $0x490] sm:$0xff]
        %v657 = vld [vmem:[%s430 + $0x498] sm:$0xff]
        %v658 = vld [vmem:[%s430 + $0x4a0] sm:$0xff]
        %v659 = vld [vmem:[%s430 + $0x4a8] sm:$0xff]
        %v660 = vld [vmem:[%s430 + $0x4b0] sm:$0xff]
        %v661 = vld [vmem:[%s430 + $0x4b8] sm:$0xff]
        %v662 = vld [vmem:[%s430 + $0x4c0] sm:$0xff]
        %v663 = vld [vmem:[%s430 + $0x4c8] sm:$0xff]
        %v664 = vld [vmem:[%s430 + $0x4d0] sm:$0xff]
        %v665 = vld [vmem:[%s430 + $0x4d8] sm:$0xff]
        %v666 = vld [vmem:[%s430 + $0x4e0] sm:$0xff]
        %v667 = vld [vmem:[%s430 + $0x4e8] sm:$0xff]
        %v668 = vld [vmem:[%s430 + $0x4f0] sm:$0xff]
        %v669 = vld [vmem:[%s430 + $0x4f8] sm:$0xff]
        %v670 = vld [vmem:[%s430 + $0x500] sm:$0xff]
        %v671 = vld [vmem:[%s430 + $0x508] sm:$0xff]
        %v672 = vld [vmem:[%s430 + $0x510] sm:$0xff]
        %v673 = vld [vmem:[%s430 + $0x518] sm:$0xff]
        %v674 = vld [vmem:[%s430 + $0x520] sm:$0xff]
        %v675 = vld [vmem:[%s430 + $0x528] sm:$0xff]
        %v676 = vld [vmem:[%s430 + $0x530] sm:$0xff]
        %v677 = vld [vmem:[%s430 + $0x538] sm:$0xff]
        %v678 = vld [vmem:[%s430 + $0x540] sm:$0xff]
        %v679 = vld [vmem:[%s430 + $0x548] sm:$0xff]
        %v680 = vld [vmem:[%s430 + $0x550] sm:$0xff]
        %v681 = vld [vmem:[%s430 + $0x558] sm:$0xff]
        %v682 = vld [vmem:[%s430 + $0x560] sm:$0xff]
        %v683 = vld [vmem:[%s430 + $0x568] sm:$0xff]
        %v684 = vld [vmem:[%s430 + $0x570] sm:$0xff]
        %v685 = vld [vmem:[%s430 + $0x578] sm:$0xff]
        %v686 = vld [vmem:[%s430 + $0x580] sm:$0xff]
        %v687 = vld [vmem:[%s430 + $0x588] sm:$0xff]
        %v688 = vld [vmem:[%s430 + $0x590] sm:$0xff]
        %v689 = vld [vmem:[%s430 + $0x598] sm:$0xff]
        %v690 = vld [vmem:[%s430 + $0x5a0] sm:$0xff]
        %v691 = vld [vmem:[%s430 + $0x5a8] sm:$0xff]
        %v692 = vld [vmem:[%s430 + $0x5b0] sm:$0xff]
        %v693 = vld [vmem:[%s430 + $0x5b8] sm:$0xff]
        %v694 = vld [vmem:[%s430 + $0x5c0] sm:$0xff]
        %v695 = vld [vmem:[%s430 + $0x5c8] sm:$0xff]
        %v696 = vld [vmem:[%s430 + $0x5d0] sm:$0xff]
        %v697 = vld [vmem:[%s430 + $0x5d8] sm:$0xff]
        %v698 = vld [vmem:[%s430 + $0x5e0] sm:$0xff]
        %v699 = vld [vmem:[%s430 + $0x5e8] sm:$0xff]
        %v700 = vld [vmem:[%s430 + $0x5f0] sm:$0xff]
        %v701 = vld [vmem:[%s430 + $0x5f8] sm:$0xff]
        %v702 = vld [vmem:[%s430 + $0x600] sm:$0xff]
        %v703 = vld [vmem:[%s430 + $0x608] sm:$0xff]
        %v704 = vld [vmem:[%s430 + $0x610] sm:$0xff]
        %v705 = vld [vmem:[%s430 + $0x618] sm:$0xff]
        %v706 = vld [vmem:[%s430 + $0x620] sm:$0xff]
        %v707 = vld [vmem:[%s430 + $0x628] sm:$0xff]
        %v708 = vld [vmem:[%s430 + $0x630] sm:$0xff]
        %v709 = vld [vmem:[%s430 + $0x638] sm:$0xff]
        %v710 = vld [vmem:[%s430 + $0x640] sm:$0xff]
        %v711 = vld [vmem:[%s430 + $0x648] sm:$0xff]
        %v712 = vld [vmem:[%s430 + $0x650] sm:$0xff]
        %v713 = vld [vmem:[%s430 + $0x658] sm:$0xff]
        %v714 = vld [vmem:[%s430 + $0x660] sm:$0xff]
        %v715 = vld [vmem:[%s430 + $0x668] sm:$0xff]
        %v716 = vld [vmem:[%s430 + $0x670] sm:$0xff]
        %v717 = vld [vmem:[%s430 + $0x678] sm:$0xff]
        %v718 = vld [vmem:[%s430 + $0x680] sm:$0xff]
        %v719 = vld [vmem:[%s430 + $0x688] sm:$0xff]
        %v720 = vld [vmem:[%s430 + $0x690] sm:$0xff]
        %v721 = vld [vmem:[%s430 + $0x698] sm:$0xff]
        %v722 = vld [vmem:[%s430 + $0x6a0] sm:$0xff]
        %v723 = vld [vmem:[%s430 + $0x6a8] sm:$0xff]
        %v724 = vld [vmem:[%s430 + $0x6b0] sm:$0xff]
        %v725 = vld [vmem:[%s430 + $0x6b8] sm:$0xff]
        %v726 = vld [vmem:[%s430 + $0x6c0] sm:$0xff]
        %v727 = vld [vmem:[%s430 + $0x6c8] sm:$0xff]
        %v728 = vld [vmem:[%s430 + $0x6d0] sm:$0xff]
        %v729 = vld [vmem:[%s430 + $0x6d8] sm:$0xff]
        %v730 = vld [vmem:[%s430 + $0x6e0] sm:$0xff]
        %v731 = vld [vmem:[%s430 + $0x6e8] sm:$0xff]
        %v732 = vld [vmem:[%s430 + $0x6f0] sm:$0xff]
        %v733 = vld [vmem:[%s430 + $0x6f8] sm:$0xff]
        %v734 = vld [vmem:[%s430 + $0x700] sm:$0xff]
        %v735 = vld [vmem:[%s430 + $0x708] sm:$0xff]
        %v736 = vld [vmem:[%s430 + $0x710] sm:$0xff]
        %v737 = vld [vmem:[%s430 + $0x718] sm:$0xff]
        %v738 = vld [vmem:[%s430 + $0x720] sm:$0xff]
        %v739 = vld [vmem:[%s430 + $0x728] sm:$0xff]
        %v740 = vld [vmem:[%s430 + $0x730] sm:$0xff]
        %v741 = vld [vmem:[%s430 + $0x738] sm:$0xff]
        %v742 = vld [vmem:[%s430 + $0x740] sm:$0xff]
        %v743 = vld [vmem:[%s430 + $0x748] sm:$0xff]
        %v744 = vld [vmem:[%s430 + $0x750] sm:$0xff]
        %v745 = vld [vmem:[%s430 + $0x758] sm:$0xff]
        %v746 = vld [vmem:[%s430 + $0x760] sm:$0xff]
        %v747 = vld [vmem:[%s430 + $0x768] sm:$0xff]
        %v748 = vld [vmem:[%s430 + $0x770] sm:$0xff]
        %v749 = vld [vmem:[%s430 + $0x778] sm:$0xff]
        %v750 = vld [vmem:[%s430 + $0x780] sm:$0xff]
        %v751 = vld [vmem:[%s430 + $0x788] sm:$0xff]
        %v752 = vld [vmem:[%s430 + $0x790] sm:$0xff]
        %v753 = vld [vmem:[%s430 + $0x798] sm:$0xff]
        %v754 = vld [vmem:[%s430 + $0x7a0] sm:$0xff]
        %v755 = vld [vmem:[%s430 + $0x7a8] sm:$0xff]
        %v756 = vld [vmem:[%s430 + $0x7b0] sm:$0xff]
        %v757 = vld [vmem:[%s430 + $0x7b8] sm:$0xff]
        %v758 = vld [vmem:[%s430 + $0x7c0] sm:$0xff]
        %v759 = vld [vmem:[%s430 + $0x7c8] sm:$0xff]
        %v760 = vld [vmem:[%s430 + $0x7d0] sm:$0xff]
        %v761 = vld [vmem:[%s430 + $0x7d8] sm:$0xff]
        %v762 = vld [vmem:[%s430 + $0x7e0] sm:$0xff]
        %v763 = vld [vmem:[%s430 + $0x7e8] sm:$0xff]
        %v764 = vld [vmem:[%s430 + $0x7f0] sm:$0xff]
        %v765 = vld [vmem:[%s430 + $0x7f8] sm:$0xff]
        %v766 = vld [vmem:[%s430 + $0x800] sm:$0xff]
        %v767 = vld [vmem:[%s430 + $0x808] sm:$0xff]
        %v768 = vld [vmem:[%s430 + $0x810] sm:$0xff]
        %v769 = vld [vmem:[%s430 + $0x818] sm:$0xff]
        %v770 = vld [vmem:[%s430 + $0x820] sm:$0xff]
        %v771 = vld [vmem:[%s430 + $0x828] sm:$0xff]
        %v772 = vld [vmem:[%s430 + $0x830] sm:$0xff]
        %v773 = vld [vmem:[%s430 + $0x838] sm:$0xff]
        %v774 = vld [vmem:[%s430 + $0x840] sm:$0xff]
        %v775 = vld [vmem:[%s430 + $0x848] sm:$0xff]
        %v776 = vld [vmem:[%s430 + $0x850] sm:$0xff]
        %v777 = vld [vmem:[%s430 + $0x858] sm:$0xff]
        %v778 = vld [vmem:[%s430 + $0x860] sm:$0xff]
        %v779 = vld [vmem:[%s430 + $0x868] sm:$0xff]
        %v780 = vld [vmem:[%s430 + $0x870] sm:$0xff]
        %v781 = vld [vmem:[%s430 + $0x878] sm:$0xff]
        %v782 = vld [vmem:[%s430 + $0x880] sm:$0xff]
        %v783 = vld [vmem:[%s430 + $0x888] sm:$0xff]
        %v784 = vld [vmem:[%s430 + $0x890] sm:$0xff]
        %v785 = vld [vmem:[%s430 + $0x898] sm:$0xff]
        %v786 = vld [vmem:[%s430 + $0x8a0] sm:$0xff]
        %v787 = vld [vmem:[%s430 + $0x8a8] sm:$0xff]
        %v788 = vld [vmem:[%s430 + $0x8b0] sm:$0xff]
        %v789 = vld [vmem:[%s430 + $0x8b8] sm:$0xff]
        %v790 = vld [vmem:[%s430 + $0x8c0] sm:$0xff]
        %v791 = vld [vmem:[%s430 + $0x8c8] sm:$0xff]
        %v792 = vld [vmem:[%s430 + $0x8d0] sm:$0xff]
        %v793 = vld [vmem:[%s430 + $0x8d8] sm:$0xff]
        %v794 = vld [vmem:[%s430 + $0x8e0] sm:$0xff]
        %v795 = vld [vmem:[%s430 + $0x8e8] sm:$0xff]
        %v796 = vld [vmem:[%s430 + $0x8f0] sm:$0xff]
        %v797 = vld [vmem:[%s430 + $0x8f8] sm:$0xff]
        %v798 = vld [vmem:[%s430 + $0x900] sm:$0xff]
        %v799 = vld [vmem:[%s430 + $0x908] sm:$0xff]
        %v800 = vld [vmem:[%s430 + $0x910] sm:$0xff]
        %v801 = vld [vmem:[%s430 + $0x918] sm:$0xff]
        %v802 = vld [vmem:[%s430 + $0x920] sm:$0xff]
        %v803 = vld [vmem:[%s430 + $0x928] sm:$0xff]
        %v804 = vld [vmem:[%s430 + $0x930] sm:$0xff]
        %v805 = vld [vmem:[%s430 + $0x938] sm:$0xff]
        %v806 = vld [vmem:[%s430 + $0x940] sm:$0xff]
        %v807 = vld [vmem:[%s430 + $0x948] sm:$0xff]
        %v808 = vld [vmem:[%s430 + $0x950] sm:$0xff]
        %v809 = vld [vmem:[%s430 + $0x958] sm:$0xff]
        %v810 = vld [vmem:[%s430 + $0x960] sm:$0xff]
        %v811 = vld [vmem:[%s430 + $0x968] sm:$0xff]
        %v812 = vld [vmem:[%s430 + $0x970] sm:$0xff]
        %v813 = vld [vmem:[%s430 + $0x978] sm:$0xff]
        %v814 = vld [vmem:[%s430 + $0x980] sm:$0xff]
        %v815 = vld [vmem:[%s430 + $0x988] sm:$0xff]
        %v816 = vld [vmem:[%s430 + $0x990] sm:$0xff]
        %v817 = vld [vmem:[%s430 + $0x998] sm:$0xff]
        %v818 = vld [vmem:[%s430 + $0x9a0] sm:$0xff]
        %v819 = vld [vmem:[%s430 + $0x9a8] sm:$0xff]
        %v820 = vld [vmem:[%s430 + $0x9b0] sm:$0xff]
        %v821 = vld [vmem:[%s430 + $0x9b8] sm:$0xff]
        %v822 = vld [vmem:[%s430 + $0x9c0] sm:$0xff]
        %v823 = vld [vmem:[%s430 + $0x9c8] sm:$0xff]
        %v824 = vld [vmem:[%s430 + $0x9d0] sm:$0xff]
        %v825 = vld [vmem:[%s430 + $0x9d8] sm:$0xff]
        %v826 = vld [vmem:[%s430 + $0x9e0] sm:$0xff]
        %v827 = vld [vmem:[%s430 + $0x9e8] sm:$0xff]
        %v828 = vld [vmem:[%s430 + $0x9f0] sm:$0xff]
        %v829 = vld [vmem:[%s430 + $0x9f8] sm:$0xff]
        %v830 = vld [vmem:[%s434] sm:$0xff]
        %v831 = vld [vmem:[%s434 + $0x8] sm:$0x3]
        %v834 = vlaneseq
        %v835 = vshrl.u32 %v834, 7
        %v836 = vsub.s32 0, %v835
        %v837 = vrot.slane %v830, %v836
        %v838 = vlaneseq
        %v839 = vshrl.u32 %v838, 7
        %v840 = vsub.s32 1, %v839
        %v841 = vrot.slane %v830, %v840
        %v842 = vlaneseq
        %v843 = vshrl.u32 %v842, 7
        %v844 = vsub.s32 2, %v843
        %v845 = vrot.slane %v830, %v844
        %v846 = vlaneseq
        %v847 = vshrl.u32 %v846, 7
        %v848 = vsub.s32 3, %v847
        %v849 = vrot.slane %v830, %v848
        %v850 = vlaneseq
        %v851 = vshrl.u32 %v850, 7
        %v852 = vsub.s32 4, %v851
        %v853 = vrot.slane %v830, %v852
        %v854 = vlaneseq
        %v855 = vshrl.u32 %v854, 7
        %v856 = vsub.s32 5, %v855
        %v857 = vrot.slane %v830, %v856
        %v858 = vlaneseq
        %v859 = vshrl.u32 %v858, 7
        %v860 = vsub.s32 6, %v859
        %v861 = vrot.slane %v830, %v860
        %v862 = vlaneseq
        %v863 = vshrl.u32 %v862, 7
        %v864 = vsub.s32 7, %v863
        %v865 = vrot.slane %v830, %v864
        %v866 = vlaneseq
        %v867 = vshrl.u32 %v866, 7
        %v868 = vsub.s32 0, %v867
        %v869 = vrot.slane %v831, %v868
        %v870 = vlaneseq
        %v871 = vshrl.u32 %v870, 7
        %v872 = vsub.s32 1, %v871
        %v873 = vrot.slane %v831, %v872
        %884 = vmatprep.subr.mxu0 %v661
        %885 = vmatpush1.msra.mxu0 %v660
        %886 = vmatprep.subr.mxu0 %v651
        %887 = vmatpush1.msra.mxu0 %v650
        %888 = vmatprep.subr.mxu0 %v641
        %889 = vmatpush1.msra.mxu0 %v640
        %890 = vmatprep.subr.mxu0 %v631
        %891 = vmatpush1.msra.mxu0 %v630
        %892 = vmatprep.subr.mxu0 %v621
        %893 = vmatpush1.msra.mxu0 %v620
        %894 = vmatprep.subr.mxu0 %v611
        %895 = vmatpush1.msra.mxu0 %v610
        %896 = vmatprep.subr.mxu0 %v601
        %897 = vmatpush1.msra.mxu0 %v600
        %898 = vmatprep.subr.mxu0 %v591
        %899 = vmatpush1.msra.mxu0 %v590
        %900 = vmatprep.subr.mxu0 %v581
        %901 = vmatpush1.msra.mxu0 %v580
        %902 = vmatprep.subr.mxu0 %v571
        %903 = vmatpush1.msra.mxu0 %v570
        %904 = vmatprep.subr.mxu0 %v561
        %905 = vmatpush1.msra.mxu0 %v560
        %906 = vmatprep.subr.mxu0 %v551
        %907 = vmatpush1.msra.mxu0 %v550
        %908 = vmatprep.subr.mxu0 %v541
        %909 = vmatpush1.msra.mxu0 %v540
        %910 = vmatprep.subr.mxu0 %v531
        %911 = vmatpush1.msra.mxu0 %v530
        %912 = vmatprep.subr.mxu0 %v521
        %913 = vmatpush1.msra.mxu0 %v520
        %914 = vmatprep.subr.mxu0 %v511
        %915 = vmatpush1.msra.mxu0 %v510
        %916 = vmatprep.subr.mxu0 %v821
        %917 = vmatpush2.msra.mxu0 %v820
        %918 = vmatprep.subr.mxu0 %v811
        %919 = vmatpush2.msra.mxu0 %v810
        %920 = vmatprep.subr.mxu0 %v801
        %921 = vmatpush2.msra.mxu0 %v800
        %922 = vmatprep.subr.mxu0 %v791
        %923 = vmatpush2.msra.mxu0 %v790
        %924 = vmatprep.subr.mxu0 %v781
        %925 = vmatpush2.msra.mxu0 %v780
        %926 = vmatprep.subr.mxu0 %v771
        %927 = vmatpush2.msra.mxu0 %v770
        %928 = vmatprep.subr.mxu0 %v761
        %929 = vmatpush2.msra.mxu0 %v760
        %930 = vmatprep.subr.mxu0 %v751
        %931 = vmatpush2.msra.mxu0 %v750
        %932 = vmatprep.subr.mxu0 %v741
        %933 = vmatpush2.msra.mxu0 %v740
        %934 = vmatprep.subr.mxu0 %v731
        %935 = vmatpush2.msra.mxu0 %v730
        %936 = vmatprep.subr.mxu0 %v721
        %937 = vmatpush2.msra.mxu0 %v720
        %938 = vmatprep.subr.mxu0 %v711
        %939 = vmatpush2.msra.mxu0 %v710
        %940 = vmatprep.subr.mxu0 %v701
        %941 = vmatpush2.msra.mxu0 %v700
        %942 = vmatprep.subr.mxu0 %v691
        %943 = vmatpush2.msra.mxu0 %v690
        %944 = vmatprep.subr.mxu0 %v681
        %945 = vmatpush2.msra.mxu0 %v680
        %946 = vmatprep.subr.mxu0 %v671
        %947 = vmatpush2.msra.mxu0 %v670
        %948 = vmatprep.mubr.f32.mxu0 %v509
        %949 = vmatmul.mubr.f32.gmra.mxu0 %v508
        %v950 = vpop.f32.mrf.mxu0
        %v951 = vadd.f32 %v837, %v950
        %v952 = vpop.f32.mrf.mxu0
        %v953 = vadd.f32 %v841, %v952
        %954 = vdwg.mxu0
        %955 = vmatprep.subr.mxu0 %v663
        %956 = vmatpush1.msra.mxu0 %v662
        %957 = vmatprep.subr.mxu0 %v653
        %958 = vmatpush1.msra.mxu0 %v652
        %959 = vmatprep.subr.mxu0 %v643
        %960 = vmatpush1.msra.mxu0 %v642
        %961 = vmatprep.subr.mxu0 %v633
        %962 = vmatpush1.msra.mxu0 %v632
        %963 = vmatprep.subr.mxu0 %v623
        %964 = vmatpush1.msra.mxu0 %v622
        %965 = vmatprep.subr.mxu0 %v613
        %966 = vmatpush1.msra.mxu0 %v612
        %967 = vmatprep.subr.mxu0 %v603
        %968 = vmatpush1.msra.mxu0 %v602
        %969 = vmatprep.subr.mxu0 %v593
        %970 = vmatpush1.msra.mxu0 %v592
        %971 = vmatprep.subr.mxu0 %v583
        %972 = vmatpush1.msra.mxu0 %v582
        %973 = vmatprep.subr.mxu0 %v573
        %974 = vmatpush1.msra.mxu0 %v572
        %975 = vmatprep.subr.mxu0 %v563
        %976 = vmatpush1.msra.mxu0 %v562
        %977 = vmatprep.subr.mxu0 %v553
        %978 = vmatpush1.msra.mxu0 %v552
        %979 = vmatprep.subr.mxu0 %v543
        %980 = vmatpush1.msra.mxu0 %v542
        %981 = vmatprep.subr.mxu0 %v533
        %982 = vmatpush1.msra.mxu0 %v532
        %983 = vmatprep.subr.mxu0 %v523
        %984 = vmatpush1.msra.mxu0 %v522
        %985 = vmatprep.subr.mxu0 %v513
        %986 = vmatpush1.msra.mxu0 %v512
        %987 = vmatprep.subr.mxu0 %v823
        %988 = vmatpush2.msra.mxu0 %v822
        %989 = vmatprep.subr.mxu0 %v813
        %990 = vmatpush2.msra.mxu0 %v812
        %991 = vmatprep.subr.mxu0 %v803
        %992 = vmatpush2.msra.mxu0 %v802
        %993 = vmatprep.subr.mxu0 %v793
        %994 = vmatpush2.msra.mxu0 %v792
        %995 = vmatprep.subr.mxu0 %v783
        %996 = vmatpush2.msra.mxu0 %v782
        %997 = vmatprep.subr.mxu0 %v773
        %998 = vmatpush2.msra.mxu0 %v772
        %999 = vmatprep.subr.mxu0 %v763
        %1000 = vmatpush2.msra.mxu0 %v762
        %1001 = vmatprep.subr.mxu0 %v753
        %1002 = vmatpush2.msra.mxu0 %v752
        %1003 = vmatprep.subr.mxu0 %v743
        %1004 = vmatpush2.msra.mxu0 %v742
        %1005 = vmatprep.subr.mxu0 %v733
        %1006 = vmatpush2.msra.mxu0 %v732
        %1007 = vmatprep.subr.mxu0 %v723
        %1008 = vmatpush2.msra.mxu0 %v722
        %1009 = vmatprep.subr.mxu0 %v713
        %1010 = vmatpush2.msra.mxu0 %v712
        %1011 = vmatprep.subr.mxu0 %v703
        %1012 = vmatpush2.msra.mxu0 %v702
        %1013 = vmatprep.subr.mxu0 %v693
        %1014 = vmatpush2.msra.mxu0 %v692
        %1015 = vmatprep.subr.mxu0 %v683
        %1016 = vmatpush2.msra.mxu0 %v682
        %1017 = vmatprep.subr.mxu0 %v673
        %1018 = vmatpush2.msra.mxu0 %v672
        %1019 = vmatprep.mubr.f32.mxu0 %v509
        %1020 = vmatmul.mubr.f32.gmra.mxu0 %v508
        %v1021 = vpop.f32.mrf.mxu0
        %v1022 = vadd.f32 %v845, %v1021
        %v1023 = vpop.f32.mrf.mxu0
        %v1024 = vadd.f32 %v849, %v1023
        %1025 = vdwg.mxu0
        %1026 = vmatprep.subr.mxu0 %v665
        %1027 = vmatpush1.msra.mxu0 %v664
        %1028 = vmatprep.subr.mxu0 %v655
        %1029 = vmatpush1.msra.mxu0 %v654
        %1030 = vmatprep.subr.mxu0 %v645
        %1031 = vmatpush1.msra.mxu0 %v644
        %1032 = vmatprep.subr.mxu0 %v635
        %1033 = vmatpush1.msra.mxu0 %v634
        %1034 = vmatprep.subr.mxu0 %v625
        %1035 = vmatpush1.msra.mxu0 %v624
        %1036 = vmatprep.subr.mxu0 %v615
        %1037 = vmatpush1.msra.mxu0 %v614
        %1038 = vmatprep.subr.mxu0 %v605
        %1039 = vmatpush1.msra.mxu0 %v604
        %1040 = vmatprep.subr.mxu0 %v595
        %1041 = vmatpush1.msra.mxu0 %v594
        %1042 = vmatprep.subr.mxu0 %v585
        %1043 = vmatpush1.msra.mxu0 %v584
        %1044 = vmatprep.subr.mxu0 %v575
        %1045 = vmatpush1.msra.mxu0 %v574
        %1046 = vmatprep.subr.mxu0 %v565
        %1047 = vmatpush1.msra.mxu0 %v564
        %1048 = vmatprep.subr.mxu0 %v555
        %1049 = vmatpush1.msra.mxu0 %v554
        %1050 = vmatprep.subr.mxu0 %v545
        %1051 = vmatpush1.msra.mxu0 %v544
        %1052 = vmatprep.subr.mxu0 %v535
        %1053 = vmatpush1.msra.mxu0 %v534
        %1054 = vmatprep.subr.mxu0 %v525
        %1055 = vmatpush1.msra.mxu0 %v524
        %1056 = vmatprep.subr.mxu0 %v515
        %1057 = vmatpush1.msra.mxu0 %v514
        %1058 = vmatprep.subr.mxu0 %v825
        %1059 = vmatpush2.msra.mxu0 %v824
        %1060 = vmatprep.subr.mxu0 %v815
        %1061 = vmatpush2.msra.mxu0 %v814
        %1062 = vmatprep.subr.mxu0 %v805
        %1063 = vmatpush2.msra.mxu0 %v804
        %1064 = vmatprep.subr.mxu0 %v795
        %1065 = vmatpush2.msra.mxu0 %v794
        %1066 = vmatprep.subr.mxu0 %v785
        %1067 = vmatpush2.msra.mxu0 %v784
        %1068 = vmatprep.subr.mxu0 %v775
        %1069 = vmatpush2.msra.mxu0 %v774
        %1070 = vmatprep.subr.mxu0 %v765
        %1071 = vmatpush2.msra.mxu0 %v764
        %1072 = vmatprep.subr.mxu0 %v755
        %1073 = vmatpush2.msra.mxu0 %v754
        %1074 = vmatprep.subr.mxu0 %v745
        %1075 = vmatpush2.msra.mxu0 %v744
        %1076 = vmatprep.subr.mxu0 %v735
        %1077 = vmatpush2.msra.mxu0 %v734
        %1078 = vmatprep.subr.mxu0 %v725
        %1079 = vmatpush2.msra.mxu0 %v724
        %1080 = vmatprep.subr.mxu0 %v715
        %1081 = vmatpush2.msra.mxu0 %v714
        %1082 = vmatprep.subr.mxu0 %v705
        %1083 = vmatpush2.msra.mxu0 %v704
        %1084 = vmatprep.subr.mxu0 %v695
        %1085 = vmatpush2.msra.mxu0 %v694
        %1086 = vmatprep.subr.mxu0 %v685
        %1087 = vmatpush2.msra.mxu0 %v684
        %1088 = vmatprep.subr.mxu0 %v675
        %1089 = vmatpush2.msra.mxu0 %v674
        %1090 = vmatprep.mubr.f32.mxu0 %v509
        %1091 = vmatmul.mubr.f32.gmra.mxu0 %v508
        %v1092 = vpop.f32.mrf.mxu0
        %v1093 = vadd.f32 %v853, %v1092
        %v1094 = vpop.f32.mrf.mxu0
        %v1095 = vadd.f32 %v857, %v1094
        %1096 = vdwg.mxu0
        %1097 = vmatprep.subr.mxu0 %v667
        %1098 = vmatpush1.msra.mxu0 %v666
        %1099 = vmatprep.subr.mxu0 %v657
        %1100 = vmatpush1.msra.mxu0 %v656
        %1101 = vmatprep.subr.mxu0 %v647
        %1102 = vmatpush1.msra.mxu0 %v646
        %1103 = vmatprep.subr.mxu0 %v637
        %1104 = vmatpush1.msra.mxu0 %v636
        %1105 = vmatprep.subr.mxu0 %v627
        %1106 = vmatpush1.msra.mxu0 %v626
        %1107 = vmatprep.subr.mxu0 %v617
        %1108 = vmatpush1.msra.mxu0 %v616
        %1109 = vmatprep.subr.mxu0 %v607
        %1110 = vmatpush1.msra.mxu0 %v606
        %1111 = vmatprep.subr.mxu0 %v597
        %1112 = vmatpush1.msra.mxu0 %v596
        %1113 = vmatprep.subr.mxu0 %v587
        %1114 = vmatpush1.msra.mxu0 %v586
        %1115 = vmatprep.subr.mxu0 %v577
        %1116 = vmatpush1.msra.mxu0 %v576
        %1117 = vmatprep.subr.mxu0 %v567
        %1118 = vmatpush1.msra.mxu0 %v566
        %1119 = vmatprep.subr.mxu0 %v557
        %1120 = vmatpush1.msra.mxu0 %v556
        %1121 = vmatprep.subr.mxu0 %v547
        %1122 = vmatpush1.msra.mxu0 %v546
        %1123 = vmatprep.subr.mxu0 %v537
        %1124 = vmatpush1.msra.mxu0 %v536
        %1125 = vmatprep.subr.mxu0 %v527
        %1126 = vmatpush1.msra.mxu0 %v526
        %1127 = vmatprep.subr.mxu0 %v517
        %1128 = vmatpush1.msra.mxu0 %v516
        %1129 = vmatprep.subr.mxu0 %v827
        %1130 = vmatpush2.msra.mxu0 %v826
        %1131 = vmatprep.subr.mxu0 %v817
        %1132 = vmatpush2.msra.mxu0 %v816
        %1133 = vmatprep.subr.mxu0 %v807
        %1134 = vmatpush2.msra.mxu0 %v806
        %1135 = vmatprep.subr.mxu0 %v797
        %1136 = vmatpush2.msra.mxu0 %v796
        %1137 = vmatprep.subr.mxu0 %v787
        %1138 = vmatpush2.msra.mxu0 %v786
        %1139 = vmatprep.subr.mxu0 %v777
        %1140 = vmatpush2.msra.mxu0 %v776
        %1141 = vmatprep.subr.mxu0 %v767
        %1142 = vmatpush2.msra.mxu0 %v766
        %1143 = vmatprep.subr.mxu0 %v757
        %1144 = vmatpush2.msra.mxu0 %v756
        %1145 = vmatprep.subr.mxu0 %v747
        %1146 = vmatpush2.msra.mxu0 %v746
        %1147 = vmatprep.subr.mxu0 %v737
        %1148 = vmatpush2.msra.mxu0 %v736
        %1149 = vmatprep.subr.mxu0 %v727
        %1150 = vmatpush2.msra.mxu0 %v726
        %1151 = vmatprep.subr.mxu0 %v717
        %1152 = vmatpush2.msra.mxu0 %v716
        %1153 = vmatprep.subr.mxu0 %v707
        %1154 = vmatpush2.msra.mxu0 %v706
        %1155 = vmatprep.subr.mxu0 %v697
        %1156 = vmatpush2.msra.mxu0 %v696
        %1157 = vmatprep.subr.mxu0 %v687
        %1158 = vmatpush2.msra.mxu0 %v686
        %1159 = vmatprep.subr.mxu0 %v677
        %1160 = vmatpush2.msra.mxu0 %v676
        %1161 = vmatprep.mubr.f32.mxu0 %v509
        %1162 = vmatmul.mubr.f32.gmra.mxu0 %v508
        %v1163 = vpop.f32.mrf.mxu0
        %v1164 = vadd.f32 %v861, %v1163
        %v1165 = vpop.f32.mrf.mxu0
        %v1166 = vadd.f32 %v865, %v1165
        %1167 = vdwg.mxu0
        %1168 = vmatprep.subr.mxu0 %v669
        %1169 = vmatpush1.msra.mxu0 %v668
        %1170 = vmatprep.subr.mxu0 %v659
        %1171 = vmatpush1.msra.mxu0 %v658
        %1172 = vmatprep.subr.mxu0 %v649
        %1173 = vmatpush1.msra.mxu0 %v648
        %1174 = vmatprep.subr.mxu0 %v639
        %1175 = vmatpush1.msra.mxu0 %v638
        %1176 = vmatprep.subr.mxu0 %v629
        %1177 = vmatpush1.msra.mxu0 %v628
        %1178 = vmatprep.subr.mxu0 %v619
        %1179 = vmatpush1.msra.mxu0 %v618
        %1180 = vmatprep.subr.mxu0 %v609
        %1181 = vmatpush1.msra.mxu0 %v608
        %1182 = vmatprep.subr.mxu0 %v599
        %1183 = vmatpush1.msra.mxu0 %v598
        %1184 = vmatprep.subr.mxu0 %v589
        %1185 = vmatpush1.msra.mxu0 %v588
        %1186 = vmatprep.subr.mxu0 %v579
        %1187 = vmatpush1.msra.mxu0 %v578
        %1188 = vmatprep.subr.mxu0 %v569
        %1189 = vmatpush1.msra.mxu0 %v568
        %1190 = vmatprep.subr.mxu0 %v559
        %1191 = vmatpush1.msra.mxu0 %v558
        %1192 = vmatprep.subr.mxu0 %v549
        %1193 = vmatpush1.msra.mxu0 %v548
        %1194 = vmatprep.subr.mxu0 %v539
        %1195 = vmatpush1.msra.mxu0 %v538
        %1196 = vmatprep.subr.mxu0 %v529
        %1197 = vmatpush1.msra.mxu0 %v528
        %1198 = vmatprep.subr.mxu0 %v519
        %1199 = vmatpush1.msra.mxu0 %v518
        %1200 = vmatprep.subr.mxu0 %v829
        %1201 = vmatpush2.msra.mxu0 %v828
        %1202 = vmatprep.subr.mxu0 %v819
        %1203 = vmatpush2.msra.mxu0 %v818
        %1204 = vmatprep.subr.mxu0 %v809
        %1205 = vmatpush2.msra.mxu0 %v808
        %1206 = vmatprep.subr.mxu0 %v799
        %1207 = vmatpush2.msra.mxu0 %v798
        %1208 = vmatprep.subr.mxu0 %v789
        %1209 = vmatpush2.msra.mxu0 %v788
        %1210 = vmatprep.subr.mxu0 %v779
        %1211 = vmatpush2.msra.mxu0 %v778
        %1212 = vmatprep.subr.mxu0 %v769
        %1213 = vmatpush2.msra.mxu0 %v768
        %1214 = vmatprep.subr.mxu0 %v759
        %1215 = vmatpush2.msra.mxu0 %v758
        %1216 = vmatprep.subr.mxu0 %v749
        %1217 = vmatpush2.msra.mxu0 %v748
        %1218 = vmatprep.subr.mxu0 %v739
        %1219 = vmatpush2.msra.mxu0 %v738
        %1220 = vmatprep.subr.mxu0 %v729
        %1221 = vmatpush2.msra.mxu0 %v728
        %1222 = vmatprep.subr.mxu0 %v719
        %1223 = vmatpush2.msra.mxu0 %v718
        %1224 = vmatprep.subr.mxu0 %v709
        %1225 = vmatpush2.msra.mxu0 %v708
        %1226 = vmatprep.subr.mxu0 %v699
        %1227 = vmatpush2.msra.mxu0 %v698
        %1228 = vmatprep.subr.mxu0 %v689
        %1229 = vmatpush2.msra.mxu0 %v688
        %1230 = vmatprep.subr.mxu0 %v679
        %1231 = vmatpush2.msra.mxu0 %v678
        %1232 = vmatprep.mubr.f32.mxu0 %v509
        %1233 = vmatmul.mubr.f32.gmra.mxu0 %v508
        %v1234 = vpop.f32.mrf.mxu0
        %v1235 = vadd.f32 %v869, %v1234
        %v1236 = vpop.f32.mrf.mxu0
        %v1237 = vadd.f32 %v873, %v1236
        %1238 = vdwg.mxu0
        %1239 = vmatprep.subr.mxu0 0.0
        %1240 = vmatpush1.xpose.msra.mxu0 0.0
        %1241 = vmatprep.subr.mxu0 0.0
        %1242 = vmatpush1.xpose.msra.mxu0 0.0
        %1243 = vmatprep.subr.mxu0 0.0
        %1244 = vmatpush1.xpose.msra.mxu0 0.0
        %1245 = vmatprep.subr.mxu0 0.0
        %1246 = vmatpush1.xpose.msra.mxu0 0.0
        %1247 = vmatprep.subr.mxu0 0.0
        %1248 = vmatpush1.xpose.msra.mxu0 0.0
        %1249 = vmatprep.subr.mxu0 0.0
        %1250 = vmatpush1.xpose.msra.mxu0 0.0
        %1251 = vmatprep.subr.mxu0 0.0
        %1252 = vmatpush1.xpose.msra.mxu0 0.0
        %1253 = vmatprep.subr.mxu0 0.0
        %1254 = vmatpush1.xpose.msra.mxu0 0.0
        %1255 = vmatprep.subr.mxu0 0.0
        %1256 = vmatpush1.xpose.msra.mxu0 0.0
        %1257 = vmatprep.subr.mxu0 0.0
        %1258 = vmatpush1.xpose.msra.mxu0 0.0
        %1259 = vmatprep.subr.mxu0 0.0
        %1260 = vmatpush1.xpose.msra.mxu0 0.0
        %1261 = vmatprep.subr.mxu0 0.0
        %1262 = vmatpush1.xpose.msra.mxu0 0.0
        %1263 = vmatprep.subr.mxu0 0.0
        %1264 = vmatpush1.xpose.msra.mxu0 0.0
        %1265 = vmatprep.subr.mxu0 0.0
        %1266 = vmatpush1.xpose.msra.mxu0 0.0
        %1267 = vmatprep.subr.mxu0 0.0
        %1268 = vmatpush1.xpose.msra.mxu0 0.0
        %1269 = vmatprep.subr.mxu0 0.0
        %1270 = vmatpush1.xpose.msra.mxu0 %v1022
        %1271 = vmatprep.subr.mxu0 0.0
        %1272 = vmatpush2.xpose.msra.mxu0 0.0
        %1273 = vmatprep.subr.mxu0 0.0
        %1274 = vmatpush2.xpose.msra.mxu0 0.0
        %1275 = vmatprep.subr.mxu0 0.0
        %1276 = vmatpush2.xpose.msra.mxu0 0.0
        %1277 = vmatprep.subr.mxu0 0.0
        %1278 = vmatpush2.xpose.msra.mxu0 0.0
        %1279 = vmatprep.subr.mxu0 0.0
        %1280 = vmatpush2.xpose.msra.mxu0 0.0
        %1281 = vmatprep.subr.mxu0 0.0
        %1282 = vmatpush2.xpose.msra.mxu0 0.0
        %1283 = vmatprep.subr.mxu0 0.0
        %1284 = vmatpush2.xpose.msra.mxu0 0.0
        %1285 = vmatprep.subr.mxu0 0.0
        %1286 = vmatpush2.xpose.msra.mxu0 0.0
        %1287 = vmatprep.subr.mxu0 0.0
        %1288 = vmatpush2.xpose.msra.mxu0 0.0
        %1289 = vmatprep.subr.mxu0 0.0
        %1290 = vmatpush2.xpose.msra.mxu0 0.0
        %1291 = vmatprep.subr.mxu0 0.0
        %1292 = vmatpush2.xpose.msra.mxu0 0.0
        %1293 = vmatprep.subr.mxu0 0.0
        %1294 = vmatpush2.xpose.msra.mxu0 0.0
        %1295 = vmatprep.subr.mxu0 0.0
        %1296 = vmatpush2.xpose.msra.mxu0 0.0
        %1297 = vmatprep.subr.mxu0 0.0
        %1298 = vmatpush2.xpose.msra.mxu0 0.0
        %1299 = vmatprep.subr.mxu0 0.0
        %1300 = vmatpush2.xpose.msra.mxu0 0.0
        %1301 = vmatprep.subr.mxu0 0.0
        %1302 = vmatpush2.xpose.msra.mxu0 0.0
        %1303 = vmatprep.mubr.f32.mxu0 0.0
        %1304 = vmatmul.mubr.f32.gmra.mxu0 %v951
        %v1305 = vpop.f32.mrf.mxu0
        %v1306 = vadd.f32 0.0, %v1305
        %v1307 = vpop.f32.mrf.mxu0
        %1308 = vdwg.mxu0
        %1309 = vmatprep.subr.mxu0 0.0
        %1310 = vmatpush1.xpose.msra.mxu0 0.0
        %1311 = vmatprep.subr.mxu0 0.0
        %1312 = vmatpush1.xpose.msra.mxu0 0.0
        %1313 = vmatprep.subr.mxu0 0.0
        %1314 = vmatpush1.xpose.msra.mxu0 0.0
        %1315 = vmatprep.subr.mxu0 0.0
        %1316 = vmatpush1.xpose.msra.mxu0 0.0
        %1317 = vmatprep.subr.mxu0 0.0
        %1318 = vmatpush1.xpose.msra.mxu0 0.0
        %1319 = vmatprep.subr.mxu0 0.0
        %1320 = vmatpush1.xpose.msra.mxu0 0.0
        %1321 = vmatprep.subr.mxu0 0.0
        %1322 = vmatpush1.xpose.msra.mxu0 0.0
        %1323 = vmatprep.subr.mxu0 0.0
        %1324 = vmatpush1.xpose.msra.mxu0 0.0
        %1325 = vmatprep.subr.mxu0 0.0
        %1326 = vmatpush1.xpose.msra.mxu0 0.0
        %1327 = vmatprep.subr.mxu0 0.0
        %1328 = vmatpush1.xpose.msra.mxu0 0.0
        %1329 = vmatprep.subr.mxu0 0.0
        %1330 = vmatpush1.xpose.msra.mxu0 0.0
        %1331 = vmatprep.subr.mxu0 0.0
        %1332 = vmatpush1.xpose.msra.mxu0 0.0
        %1333 = vmatprep.subr.mxu0 0.0
        %1334 = vmatpush1.xpose.msra.mxu0 0.0
        %1335 = vmatprep.subr.mxu0 0.0
        %1336 = vmatpush1.xpose.msra.mxu0 0.0
        %1337 = vmatprep.subr.mxu0 0.0
        %1338 = vmatpush1.xpose.msra.mxu0 0.0
        %1339 = vmatprep.subr.mxu0 0.0
        %1340 = vmatpush1.xpose.msra.mxu0 %v1024
        %1341 = vmatprep.subr.mxu0 0.0
        %1342 = vmatpush2.xpose.msra.mxu0 0.0
        %1343 = vmatprep.subr.mxu0 0.0
        %1344 = vmatpush2.xpose.msra.mxu0 0.0
        %1345 = vmatprep.subr.mxu0 0.0
        %1346 = vmatpush2.xpose.msra.mxu0 0.0
        %1347 = vmatprep.subr.mxu0 0.0
        %1348 = vmatpush2.xpose.msra.mxu0 0.0
        %1349 = vmatprep.subr.mxu0 0.0
        %1350 = vmatpush2.xpose.msra.mxu0 0.0
        %1351 = vmatprep.subr.mxu0 0.0
        %1352 = vmatpush2.xpose.msra.mxu0 0.0
        %1353 = vmatprep.subr.mxu0 0.0
        %1354 = vmatpush2.xpose.msra.mxu0 0.0
        %1355 = vmatprep.subr.mxu0 0.0
        %1356 = vmatpush2.xpose.msra.mxu0 0.0
        %1357 = vmatprep.subr.mxu0 0.0
        %1358 = vmatpush2.xpose.msra.mxu0 0.0
        %1359 = vmatprep.subr.mxu0 0.0
        %1360 = vmatpush2.xpose.msra.mxu0 0.0
        %1361 = vmatprep.subr.mxu0 0.0
        %1362 = vmatpush2.xpose.msra.mxu0 0.0
        %1363 = vmatprep.subr.mxu0 0.0
        %1364 = vmatpush2.xpose.msra.mxu0 0.0
        %1365 = vmatprep.subr.mxu0 0.0
        %1366 = vmatpush2.xpose.msra.mxu0 0.0
        %1367 = vmatprep.subr.mxu0 0.0
        %1368 = vmatpush2.xpose.msra.mxu0 0.0
        %1369 = vmatprep.subr.mxu0 0.0
        %1370 = vmatpush2.xpose.msra.mxu0 0.0
        %1371 = vmatprep.subr.mxu0 0.0
        %1372 = vmatpush2.xpose.msra.mxu0 0.0
        %1373 = vmatprep.mubr.f32.mxu0 0.0
        %1374 = vmatmul.mubr.f32.gmra.mxu0 %v953
        %v1375 = vpop.f32.mrf.mxu0
        %v1376 = vadd.f32 0.0, %v1375
        %v1377 = vpop.f32.mrf.mxu0
        %1378 = vdwg.mxu0
        %v1379 = vmul.f32 %v1306, 0.088388346
        %v1380 = vmul.f32 %v1376, 0.088388346
        %v1381 = vld [vmem:[%s425] sm:$0x1]
        %v1383 = vlaneseq
        %v1384 = vshrl.u32 %v1383, 7
        %v1385 = vsub.s32 0, %v1384
        %v1386 = vrot.slane %v1381, %v1385
        %v1388 = vadd.f32 %v1379, %v1386
        %v1389 = vadd.f32 %v1380, %v1386
        %vm1390 = vcmask 64512
        %v1391 = vsel %vm1390, %v1388, -inf
        %1392 = vmax.xlane.f32.xlu0 %v1391
        %v1393 = vpop.xlane.xlu0 %1392
        %v1394 = vsel %vm1390, %v1389, -inf
        %1395 = vmax.xlane.f32.xlu0 %v1394
        %v1396 = vpop.xlane.xlu0 %1395
        %v1397 = vsub.f32 %v1388, %v1393
        %v1398 = vsub.f32 %v1389, %v1396
        %v1399 = vmul.f32 %v1397, 1.442695
        %v1400 = vpow.pop %v1399
        %v1401 = vmul.f32 %v1398, 1.442695
        %v1402 = vpow.pop %v1401
        %v1403 = vsel %vm1390, %v1400, 0.0
        %1404 = vadd.xlane.f32.xlu0 %v1403
        %v1405 = vpop.xlane.xlu0 %1404
        %v1406 = vsel %vm1390, %v1402, 0.0
        %1407 = vadd.xlane.f32.xlu0 %v1406
        %v1408 = vpop.xlane.xlu0 %1407
        %v1409 = vrcp.pop %v1405
        %v1410 = vrcp.pop %v1408
        %v1411 = vmul.f32 %v1400, %v1409
        %v1412 = vmul.f32 %v1402, %v1410
        %v1414 = vsel %vm1390, %v1411, 0
        %1416 = vmatprep.subr.mxu0 0.0
        %1417 = vmatpush1.msra.mxu0 0.0
        %1418 = vmatprep.subr.mxu0 0.0
        %1419 = vmatpush1.msra.mxu0 0.0
        %1420 = vmatprep.subr.mxu0 0.0
        %1421 = vmatpush1.msra.mxu0 0.0
        %1422 = vmatprep.subr.mxu0 0.0
        %1423 = vmatpush1.msra.mxu0 0.0
        %1424 = vmatprep.subr.mxu0 0.0
        %1425 = vmatpush1.msra.mxu0 0.0
        %1426 = vmatprep.subr.mxu0 0.0
        %1427 = vmatpush1.msra.mxu0 0.0
        %1428 = vmatprep.subr.mxu0 0.0
        %1429 = vmatpush1.msra.mxu0 0.0
        %1430 = vmatprep.subr.mxu0 0.0
        %1431 = vmatpush1.msra.mxu0 0.0
        %1432 = vmatprep.subr.mxu0 0.0
        %1433 = vmatpush1.msra.mxu0 0.0
        %1434 = vmatprep.subr.mxu0 0.0
        %1435 = vmatpush1.msra.mxu0 0.0
        %1436 = vmatprep.subr.mxu0 0.0
        %1437 = vmatpush1.msra.mxu0 0.0
        %1438 = vmatprep.subr.mxu0 0.0
        %1439 = vmatpush1.msra.mxu0 0.0
        %1440 = vmatprep.subr.mxu0 0.0
        %1441 = vmatpush1.msra.mxu0 0.0
        %1442 = vmatprep.subr.mxu0 0.0
        %1443 = vmatpush1.msra.mxu0 0.0
        %1444 = vmatprep.subr.mxu0 0.0
        %1445 = vmatpush1.msra.mxu0 0.0
        %1446 = vmatprep.subr.mxu0 0.0
        %1447 = vmatpush1.msra.mxu0 %v1093
        %1448 = vmatprep.subr.mxu0 0.0
        %1449 = vmatpush2.msra.mxu0 0.0
        %1450 = vmatprep.subr.mxu0 0.0
        %1451 = vmatpush2.msra.mxu0 0.0
        %1452 = vmatprep.subr.mxu0 0.0
        %1453 = vmatpush2.msra.mxu0 0.0
        %1454 = vmatprep.subr.mxu0 0.0
        %1455 = vmatpush2.msra.mxu0 0.0
        %1456 = vmatprep.subr.mxu0 0.0
        %1457 = vmatpush2.msra.mxu0 0.0
        %1458 = vmatprep.subr.mxu0 0.0
        %1459 = vmatpush2.msra.mxu0 0.0
        %1460 = vmatprep.subr.mxu0 0.0
        %1461 = vmatpush2.msra.mxu0 0.0
        %1462 = vmatprep.subr.mxu0 0.0
        %1463 = vmatpush2.msra.mxu0 0.0
        %1464 = vmatprep.subr.mxu0 0.0
        %1465 = vmatpush2.msra.mxu0 0.0
        %1466 = vmatprep.subr.mxu0 0.0
        %1467 = vmatpush2.msra.mxu0 0.0
        %1468 = vmatprep.subr.mxu0 0.0
        %1469 = vmatpush2.msra.mxu0 0.0
        %1470 = vmatprep.subr.mxu0 0.0
        %1471 = vmatpush2.msra.mxu0 0.0
        %1472 = vmatprep.subr.mxu0 0.0
        %1473 = vmatpush2.msra.mxu0 0.0
        %1474 = vmatprep.subr.mxu0 0.0
        %1475 = vmatpush2.msra.mxu0 0.0
        %1476 = vmatprep.subr.mxu0 0.0
        %1477 = vmatpush2.msra.mxu0 0.0
        %1478 = vmatprep.subr.mxu0 0.0
        %1479 = vmatpush2.msra.mxu0 0.0
        %1480 = vmatprep.mubr.f32.mxu0 0.0
        %1481 = vmatmul.mubr.f32.gmra.mxu0 %v1414
        %v1482 = vpop.f32.mrf.mxu0
        %v1483 = vadd.f32 0.0, %v1482
        %v1484 = vpop.f32.mrf.mxu0
        %1485 = vdwg.mxu0
        %v1487 = vsel %vm1390, %v1412, 0
        %1489 = vmatprep.subr.mxu0 0.0
        %1490 = vmatpush1.msra.mxu0 0.0
        %1491 = vmatprep.subr.mxu0 0.0
        %1492 = vmatpush1.msra.mxu0 0.0
        %1493 = vmatprep.subr.mxu0 0.0
        %1494 = vmatpush1.msra.mxu0 0.0
        %1495 = vmatprep.subr.mxu0 0.0
        %1496 = vmatpush1.msra.mxu0 0.0
        %1497 = vmatprep.subr.mxu0 0.0
        %1498 = vmatpush1.msra.mxu0 0.0
        %1499 = vmatprep.subr.mxu0 0.0
        %1500 = vmatpush1.msra.mxu0 0.0
        %1501 = vmatprep.subr.mxu0 0.0
        %1502 = vmatpush1.msra.mxu0 0.0
        %1503 = vmatprep.subr.mxu0 0.0
        %1504 = vmatpush1.msra.mxu0 0.0
        %1505 = vmatprep.subr.mxu0 0.0
        %1506 = vmatpush1.msra.mxu0 0.0
        %1507 = vmatprep.subr.mxu0 0.0
        %1508 = vmatpush1.msra.mxu0 0.0
        %1509 = vmatprep.subr.mxu0 0.0
        %1510 = vmatpush1.msra.mxu0 0.0
        %1511 = vmatprep.subr.mxu0 0.0
        %1512 = vmatpush1.msra.mxu0 0.0
        %1513 = vmatprep.subr.mxu0 0.0
        %1514 = vmatpush1.msra.mxu0 0.0
        %1515 = vmatprep.subr.mxu0 0.0
        %1516 = vmatpush1.msra.mxu0 0.0
        %1517 = vmatprep.subr.mxu0 0.0
        %1518 = vmatpush1.msra.mxu0 0.0
        %1519 = vmatprep.subr.mxu0 0.0
        %1520 = vmatpush1.msra.mxu0 %v1095
        %1521 = vmatprep.subr.mxu0 0.0
        %1522 = vmatpush2.msra.mxu0 0.0
        %1523 = vmatprep.subr.mxu0 0.0
        %1524 = vmatpush2.msra.mxu0 0.0
        %1525 = vmatprep.subr.mxu0 0.0
        %1526 = vmatpush2.msra.mxu0 0.0
        %1527 = vmatprep.subr.mxu0 0.0
        %1528 = vmatpush2.msra.mxu0 0.0
        %1529 = vmatprep.subr.mxu0 0.0
        %1530 = vmatpush2.msra.mxu0 0.0
        %1531 = vmatprep.subr.mxu0 0.0
        %1532 = vmatpush2.msra.mxu0 0.0
        %1533 = vmatprep.subr.mxu0 0.0
        %1534 = vmatpush2.msra.mxu0 0.0
        %1535 = vmatprep.subr.mxu0 0.0
        %1536 = vmatpush2.msra.mxu0 0.0
        %1537 = vmatprep.subr.mxu0 0.0
        %1538 = vmatpush2.msra.mxu0 0.0
        %1539 = vmatprep.subr.mxu0 0.0
        %1540 = vmatpush2.msra.mxu0 0.0
        %1541 = vmatprep.subr.mxu0 0.0
        %1542 = vmatpush2.msra.mxu0 0.0
        %1543 = vmatprep.subr.mxu0 0.0
        %1544 = vmatpush2.msra.mxu0 0.0
        %1545 = vmatprep.subr.mxu0 0.0
        %1546 = vmatpush2.msra.mxu0 0.0
        %1547 = vmatprep.subr.mxu0 0.0
        %1548 = vmatpush2.msra.mxu0 0.0
        %1549 = vmatprep.subr.mxu0 0.0
        %1550 = vmatpush2.msra.mxu0 0.0
        %1551 = vmatprep.subr.mxu0 0.0
        %1552 = vmatpush2.msra.mxu0 0.0
        %1553 = vmatprep.mubr.f32.mxu0 0.0
        %1554 = vmatmul.mubr.f32.gmra.mxu0 %v1487
        %v1555 = vpop.f32.mrf.mxu0
        %v1556 = vadd.f32 0.0, %v1555
        %v1557 = vpop.f32.mrf.mxu0
        %1558 = vdwg.mxu0
        %v1559 = vld [vmem:[%s439] sm:$0xff]
        %v1560 = vld [vmem:[%s439 + $0x8] sm:$0xff]
        %v1561 = vld [vmem:[%s439 + $0x10] sm:$0xff]
        %v1562 = vld [vmem:[%s439 + $0x18] sm:$0xff]
        %v1563 = vld [vmem:[%s439 + $0x20] sm:$0xff]
        %v1564 = vld [vmem:[%s439 + $0x28] sm:$0xff]
        %v1565 = vld [vmem:[%s439 + $0x30] sm:$0xff]
        %v1566 = vld [vmem:[%s439 + $0x38] sm:$0xff]
        %v1567 = vld [vmem:[%s439 + $0x40] sm:$0xff]
        %v1568 = vld [vmem:[%s439 + $0x48] sm:$0xff]
        %v1569 = vld [vmem:[%s439 + $0x50] sm:$0xff]
        %v1570 = vld [vmem:[%s439 + $0x58] sm:$0xff]
        %v1571 = vld [vmem:[%s439 + $0x60] sm:$0xff]
        %v1572 = vld [vmem:[%s439 + $0x68] sm:$0xff]
        %v1573 = vld [vmem:[%s439 + $0x70] sm:$0xff]
        %v1574 = vld [vmem:[%s439 + $0x78] sm:$0xff]
        %v1575 = vld [vmem:[%s439 + $0x80] sm:$0xff]
        %v1576 = vld [vmem:[%s439 + $0x88] sm:$0xff]
        %v1577 = vld [vmem:[%s439 + $0x90] sm:$0xff]
        %v1578 = vld [vmem:[%s439 + $0x98] sm:$0xff]
        %v1579 = vld [vmem:[%s439 + $0xa0] sm:$0xff]
        %v1580 = vld [vmem:[%s439 + $0xa8] sm:$0xff]
        %v1581 = vld [vmem:[%s439 + $0xb0] sm:$0xff]
        %v1582 = vld [vmem:[%s439 + $0xb8] sm:$0xff]
        %v1583 = vld [vmem:[%s439 + $0xc0] sm:$0xff]
        %v1584 = vld [vmem:[%s439 + $0xc8] sm:$0xff]
        %v1585 = vld [vmem:[%s439 + $0xd0] sm:$0xff]
        %v1586 = vld [vmem:[%s439 + $0xd8] sm:$0xff]
        %v1587 = vld [vmem:[%s439 + $0xe0] sm:$0xff]
        %v1588 = vld [vmem:[%s439 + $0xe8] sm:$0xff]
        %v1589 = vld [vmem:[%s439 + $0xf0] sm:$0xff]
        %v1590 = vld [vmem:[%s439 + $0xf8] sm:$0xff]
        %v1591 = vld [vmem:[%s439 + $0x100] sm:$0xff]
        %v1592 = vld [vmem:[%s439 + $0x108] sm:$0xff]
        %v1593 = vld [vmem:[%s439 + $0x110] sm:$0xff]
        %v1594 = vld [vmem:[%s439 + $0x118] sm:$0xff]
        %v1595 = vld [vmem:[%s439 + $0x120] sm:$0xff]
        %v1596 = vld [vmem:[%s439 + $0x128] sm:$0xff]
        %v1597 = vld [vmem:[%s439 + $0x130] sm:$0xff]
        %v1598 = vld [vmem:[%s439 + $0x138] sm:$0xff]
        %v1599 = vld [vmem:[%s439 + $0x140] sm:$0xff]
        %v1600 = vld [vmem:[%s439 + $0x148] sm:$0xff]
        %v1601 = vld [vmem:[%s439 + $0x150] sm:$0xff]
        %v1602 = vld [vmem:[%s439 + $0x158] sm:$0xff]
        %v1603 = vld [vmem:[%s439 + $0x160] sm:$0xff]
        %v1604 = vld [vmem:[%s439 + $0x168] sm:$0xff]
        %v1605 = vld [vmem:[%s439 + $0x170] sm:$0xff]
        %v1606 = vld [vmem:[%s439 + $0x178] sm:$0xff]
        %v1607 = vld [vmem:[%s439 + $0x180] sm:$0xff]
        %v1608 = vld [vmem:[%s439 + $0x188] sm:$0xff]
        %v1609 = vld [vmem:[%s439 + $0x190] sm:$0xff]
        %v1610 = vld [vmem:[%s439 + $0x198] sm:$0xff]
        %v1611 = vld [vmem:[%s439 + $0x1a0] sm:$0xff]
        %v1612 = vld [vmem:[%s439 + $0x1a8] sm:$0xff]
        %v1613 = vld [vmem:[%s439 + $0x1b0] sm:$0xff]
        %v1614 = vld [vmem:[%s439 + $0x1b8] sm:$0xff]
        %v1615 = vld [vmem:[%s439 + $0x1c0] sm:$0xff]
        %v1616 = vld [vmem:[%s439 + $0x1c8] sm:$0xff]
        %v1617 = vld [vmem:[%s439 + $0x1d0] sm:$0xff]
        %v1618 = vld [vmem:[%s439 + $0x1d8] sm:$0xff]
        %v1619 = vld [vmem:[%s439 + $0x1e0] sm:$0xff]
        %v1620 = vld [vmem:[%s439 + $0x1e8] sm:$0xff]
        %v1621 = vld [vmem:[%s439 + $0x1f0] sm:$0xff]
        %v1622 = vld [vmem:[%s439 + $0x1f8] sm:$0xff]
        %v1623 = vld [vmem:[%s439 + $0x200] sm:$0xff]
        %v1624 = vld [vmem:[%s439 + $0x208] sm:$0xff]
        %v1625 = vld [vmem:[%s439 + $0x210] sm:$0xff]
        %v1626 = vld [vmem:[%s439 + $0x218] sm:$0xff]
        %v1627 = vld [vmem:[%s439 + $0x220] sm:$0xff]
        %v1628 = vld [vmem:[%s439 + $0x228] sm:$0xff]
        %v1629 = vld [vmem:[%s439 + $0x230] sm:$0xff]
        %v1630 = vld [vmem:[%s439 + $0x238] sm:$0xff]
        %v1631 = vld [vmem:[%s439 + $0x240] sm:$0xff]
        %v1632 = vld [vmem:[%s439 + $0x248] sm:$0xff]
        %v1633 = vld [vmem:[%s439 + $0x250] sm:$0xff]
        %v1634 = vld [vmem:[%s439 + $0x258] sm:$0xff]
        %v1635 = vld [vmem:[%s439 + $0x260] sm:$0xff]
        %v1636 = vld [vmem:[%s439 + $0x268] sm:$0xff]
        %v1637 = vld [vmem:[%s439 + $0x270] sm:$0xff]
        %v1638 = vld [vmem:[%s439 + $0x278] sm:$0xff]
        %v1639 = vld [vmem:[%s439 + $0x280] sm:$0xff]
        %v1640 = vld [vmem:[%s439 + $0x288] sm:$0xff]
        %v1641 = vld [vmem:[%s439 + $0x290] sm:$0xff]
        %v1642 = vld [vmem:[%s439 + $0x298] sm:$0xff]
        %v1643 = vld [vmem:[%s439 + $0x2a0] sm:$0xff]
        %v1644 = vld [vmem:[%s439 + $0x2a8] sm:$0xff]
        %v1645 = vld [vmem:[%s439 + $0x2b0] sm:$0xff]
        %v1646 = vld [vmem:[%s439 + $0x2b8] sm:$0xff]
        %v1647 = vld [vmem:[%s439 + $0x2c0] sm:$0xff]
        %v1648 = vld [vmem:[%s439 + $0x2c8] sm:$0xff]
        %v1649 = vld [vmem:[%s439 + $0x2d0] sm:$0xff]
        %v1650 = vld [vmem:[%s439 + $0x2d8] sm:$0xff]
        %v1651 = vld [vmem:[%s439 + $0x2e0] sm:$0xff]
        %v1652 = vld [vmem:[%s439 + $0x2e8] sm:$0xff]
        %v1653 = vld [vmem:[%s439 + $0x2f0] sm:$0xff]
        %v1654 = vld [vmem:[%s439 + $0x2f8] sm:$0xff]
        %v1655 = vld [vmem:[%s439 + $0x300] sm:$0xff]
        %v1656 = vld [vmem:[%s439 + $0x308] sm:$0xff]
        %v1657 = vld [vmem:[%s439 + $0x310] sm:$0xff]
        %v1658 = vld [vmem:[%s439 + $0x318] sm:$0xff]
        %v1659 = vld [vmem:[%s439 + $0x320] sm:$0xff]
        %v1660 = vld [vmem:[%s439 + $0x328] sm:$0xff]
        %v1661 = vld [vmem:[%s439 + $0x330] sm:$0xff]
        %v1662 = vld [vmem:[%s439 + $0x338] sm:$0xff]
        %v1663 = vld [vmem:[%s439 + $0x340] sm:$0xff]
        %v1664 = vld [vmem:[%s439 + $0x348] sm:$0xff]
        %v1665 = vld [vmem:[%s439 + $0x350] sm:$0xff]
        %v1666 = vld [vmem:[%s439 + $0x358] sm:$0xff]
        %v1667 = vld [vmem:[%s439 + $0x360] sm:$0xff]
        %v1668 = vld [vmem:[%s439 + $0x368] sm:$0xff]
        %v1669 = vld [vmem:[%s439 + $0x370] sm:$0xff]
        %v1670 = vld [vmem:[%s439 + $0x378] sm:$0xff]
        %v1671 = vld [vmem:[%s439 + $0x380] sm:$0xff]
        %v1672 = vld [vmem:[%s439 + $0x388] sm:$0xff]
        %v1673 = vld [vmem:[%s439 + $0x390] sm:$0xff]
        %v1674 = vld [vmem:[%s439 + $0x398] sm:$0xff]
        %v1675 = vld [vmem:[%s439 + $0x3a0] sm:$0xff]
        %v1676 = vld [vmem:[%s439 + $0x3a8] sm:$0xff]
        %v1677 = vld [vmem:[%s439 + $0x3b0] sm:$0xff]
        %v1678 = vld [vmem:[%s439 + $0x3b8] sm:$0xff]
        %v1679 = vld [vmem:[%s439 + $0x3c0] sm:$0xff]
        %v1680 = vld [vmem:[%s439 + $0x3c8] sm:$0xff]
        %v1681 = vld [vmem:[%s439 + $0x3d0] sm:$0xff]
        %v1682 = vld [vmem:[%s439 + $0x3d8] sm:$0xff]
        %v1683 = vld [vmem:[%s439 + $0x3e0] sm:$0xff]
        %v1684 = vld [vmem:[%s439 + $0x3e8] sm:$0xff]
        %v1685 = vld [vmem:[%s439 + $0x3f0] sm:$0xff]
        %v1686 = vld [vmem:[%s439 + $0x3f8] sm:$0xff]
        %1687 = vmatprep.subr.mxu0 %v1620
        %1688 = vmatpush1.msra.mxu0 %v1619
        %1689 = vmatprep.subr.mxu0 %v1616
        %1690 = vmatpush1.msra.mxu0 %v1615
        %1691 = vmatprep.subr.mxu0 %v1612
        %1692 = vmatpush1.msra.mxu0 %v1611
        %1693 = vmatprep.subr.mxu0 %v1608
        %1694 = vmatpush1.msra.mxu0 %v1607
        %1695 = vmatprep.subr.mxu0 %v1604
        %1696 = vmatpush1.msra.mxu0 %v1603
        %1697 = vmatprep.subr.mxu0 %v1600
        %1698 = vmatpush1.msra.mxu0 %v1599
        %1699 = vmatprep.subr.mxu0 %v1596
        %1700 = vmatpush1.msra.mxu0 %v1595
        %1701 = vmatprep.subr.mxu0 %v1592
        %1702 = vmatpush1.msra.mxu0 %v1591
        %1703 = vmatprep.subr.mxu0 %v1588
        %1704 = vmatpush1.msra.mxu0 %v1587
        %1705 = vmatprep.subr.mxu0 %v1584
        %1706 = vmatpush1.msra.mxu0 %v1583
        %1707 = vmatprep.subr.mxu0 %v1580
        %1708 = vmatpush1.msra.mxu0 %v1579
        %1709 = vmatprep.subr.mxu0 %v1576
        %1710 = vmatpush1.msra.mxu0 %v1575
        %1711 = vmatprep.subr.mxu0 %v1572
        %1712 = vmatpush1.msra.mxu0 %v1571
        %1713 = vmatprep.subr.mxu0 %v1568
        %1714 = vmatpush1.msra.mxu0 %v1567
        %1715 = vmatprep.subr.mxu0 %v1564
        %1716 = vmatpush1.msra.mxu0 %v1563
        %1717 = vmatprep.subr.mxu0 %v1560
        %1718 = vmatpush1.msra.mxu0 %v1559
        %1719 = vmatprep.subr.mxu0 %v1684
        %1720 = vmatpush2.msra.mxu0 %v1683
        %1721 = vmatprep.subr.mxu0 %v1680
        %1722 = vmatpush2.msra.mxu0 %v1679
        %1723 = vmatprep.subr.mxu0 %v1676
        %1724 = vmatpush2.msra.mxu0 %v1675
        %1725 = vmatprep.subr.mxu0 %v1672
        %1726 = vmatpush2.msra.mxu0 %v1671
        %1727 = vmatprep.subr.mxu0 %v1668
        %1728 = vmatpush2.msra.mxu0 %v1667
        %1729 = vmatprep.subr.mxu0 %v1664
        %1730 = vmatpush2.msra.mxu0 %v1663
        %1731 = vmatprep.subr.mxu0 %v1660
        %1732 = vmatpush2.msra.mxu0 %v1659
        %1733 = vmatprep.subr.mxu0 %v1656
        %1734 = vmatpush2.msra.mxu0 %v1655
        %1735 = vmatprep.subr.mxu0 %v1652
        %1736 = vmatpush2.msra.mxu0 %v1651
        %1737 = vmatprep.subr.mxu0 %v1648
        %1738 = vmatpush2.msra.mxu0 %v1647
        %1739 = vmatprep.subr.mxu0 %v1644
        %1740 = vmatpush2.msra.mxu0 %v1643
        %1741 = vmatprep.subr.mxu0 %v1640
        %1742 = vmatpush2.msra.mxu0 %v1639
        %1743 = vmatprep.subr.mxu0 %v1636
        %1744 = vmatpush2.msra.mxu0 %v1635
        %1745 = vmatprep.subr.mxu0 %v1632
        %1746 = vmatpush2.msra.mxu0 %v1631
        %1747 = vmatprep.subr.mxu0 %v1628
        %1748 = vmatpush2.msra.mxu0 %v1627
        %1749 = vmatprep.subr.mxu0 %v1624
        %1750 = vmatpush2.msra.mxu0 %v1623
        %1751 = vmatprep.mubr.f32.mxu0 %v1556
        %1752 = vmatmul.mubr.f32.gmra.mxu0 %v1483
        %v1753 = vpop.f32.mrf.mxu0
        %v1754 = vadd.f32 0.0, %v1753
        %v1755 = vpop.f32.mrf.mxu0
        %v1756 = vadd.f32 0.0, %v1755
        %1757 = vdwg.mxu0
        %1758 = vmatprep.subr.mxu0 %v1622
        %1759 = vmatpush1.msra.mxu0 %v1621
        %1760 = vmatprep.subr.mxu0 %v1618
        %1761 = vmatpush1.msra.mxu0 %v1617
        %1762 = vmatprep.subr.mxu0 %v1614
        %1763 = vmatpush1.msra.mxu0 %v1613
        %1764 = vmatprep.subr.mxu0 %v1610
        %1765 = vmatpush1.msra.mxu0 %v1609
        %1766 = vmatprep.subr.mxu0 %v1606
        %1767 = vmatpush1.msra.mxu0 %v1605
        %1768 = vmatprep.subr.mxu0 %v1602
        %1769 = vmatpush1.msra.mxu0 %v1601
        %1770 = vmatprep.subr.mxu0 %v1598
        %1771 = vmatpush1.msra.mxu0 %v1597
        %1772 = vmatprep.subr.mxu0 %v1594
        %1773 = vmatpush1.msra.mxu0 %v1593
        %1774 = vmatprep.subr.mxu0 %v1590
        %1775 = vmatpush1.msra.mxu0 %v1589
        %1776 = vmatprep.subr.mxu0 %v1586
        %1777 = vmatpush1.msra.mxu0 %v1585
        %1778 = vmatprep.subr.mxu0 %v1582
        %1779 = vmatpush1.msra.mxu0 %v1581
        %1780 = vmatprep.subr.mxu0 %v1578
        %1781 = vmatpush1.msra.mxu0 %v1577
        %1782 = vmatprep.subr.mxu0 %v1574
        %1783 = vmatpush1.msra.mxu0 %v1573
        %1784 = vmatprep.subr.mxu0 %v1570
        %1785 = vmatpush1.msra.mxu0 %v1569
        %1786 = vmatprep.subr.mxu0 %v1566
        %1787 = vmatpush1.msra.mxu0 %v1565
        %1788 = vmatprep.subr.mxu0 %v1562
        %1789 = vmatpush1.msra.mxu0 %v1561
        %1790 = vmatprep.subr.mxu0 %v1686
        %1791 = vmatpush2.msra.mxu0 %v1685
        %1792 = vmatprep.subr.mxu0 %v1682
        %1793 = vmatpush2.msra.mxu0 %v1681
        %1794 = vmatprep.subr.mxu0 %v1678
        %1795 = vmatpush2.msra.mxu0 %v1677
        %1796 = vmatprep.subr.mxu0 %v1674
        %1797 = vmatpush2.msra.mxu0 %v1673
        %1798 = vmatprep.subr.mxu0 %v1670
        %1799 = vmatpush2.msra.mxu0 %v1669
        %1800 = vmatprep.subr.mxu0 %v1666
        %1801 = vmatpush2.msra.mxu0 %v1665
        %1802 = vmatprep.subr.mxu0 %v1662
        %1803 = vmatpush2.msra.mxu0 %v1661
        %1804 = vmatprep.subr.mxu0 %v1658
        %1805 = vmatpush2.msra.mxu0 %v1657
        %1806 = vmatprep.subr.mxu0 %v1654
        %1807 = vmatpush2.msra.mxu0 %v1653
        %1808 = vmatprep.subr.mxu0 %v1650
        %1809 = vmatpush2.msra.mxu0 %v1649
        %1810 = vmatprep.subr.mxu0 %v1646
        %1811 = vmatpush2.msra.mxu0 %v1645
        %1812 = vmatprep.subr.mxu0 %v1642
        %1813 = vmatpush2.msra.mxu0 %v1641
        %1814 = vmatprep.subr.mxu0 %v1638
        %1815 = vmatpush2.msra.mxu0 %v1637
        %1816 = vmatprep.subr.mxu0 %v1634
        %1817 = vmatpush2.msra.mxu0 %v1633
        %1818 = vmatprep.subr.mxu0 %v1630
        %1819 = vmatpush2.msra.mxu0 %v1629
        %1820 = vmatprep.subr.mxu0 %v1626
        %1821 = vmatpush2.msra.mxu0 %v1625
        %1822 = vmatprep.mubr.f32.mxu0 %v1556
        %1823 = vmatmul.mubr.f32.gmra.mxu0 %v1483
        %v1824 = vpop.f32.mrf.mxu0
        %v1825 = vadd.f32 0.0, %v1824
        %v1826 = vpop.f32.mrf.mxu0
        %v1827 = vadd.f32 0.0, %v1826
        %1828 = vdwg.mxu0
        %v1829 = vadd.f32 %v1754, %v1164
        %v1830 = vadd.f32 %v1756, %v1166
        %v1831 = vadd.f32 %v1825, %v1235
        %v1832 = vadd.f32 %v1827, %v1237
        %v1833 = vxor.u32 %v1831, 2147483648
        %v1834 = vxor.u32 %v1832, 2147483648
        %v1835 = vmul.f32 %v1833, 1.442695
        %v1836 = vpow.pop %v1835
        %v1837 = vmul.f32 %v1834, 1.442695
        %v1838 = vpow.pop %v1837
        %v1839 = vadd.f32 %v1836, 1.0
        %v1840 = vadd.f32 %v1838, 1.0
        %v1841 = vrcp.pop %v1839
        %v1842 = vmul.f32 1.0, %v1841
        %v1843 = vrcp.pop %v1840
        %v1844 = vmul.f32 1.0, %v1843
        %v1845 = vmul.f32 %v1829, %v1842
        %v1846 = vmul.f32 %v1830, %v1844
        %v1847 = vadd.f32 %v456, %v1845
        %v1848 = vadd.f32 %v457, %v1846
        %1849 = vst [vmem:[#allocation2] sm:$0xff] %v1847
        %1850 = vst [vmem:[#allocation2 + $0x8] sm:$0xff] %v1848
        %p1851 = scmp.eq.s32.totalorder %s28, 5
        // Predicated region
        $region61: #{aoa_refiner_core.1} parent=55 // pred_check
          %p1852 = pneg %p1851
        $region62: #{aoa_refiner_core.1} parent=55 // pred_check_branch
          %1854 = sbr.rel (%p1852) target = $region64
        $region63: #{aoa_refiner_core.1} parent=55 // pred_region
          %v1855 = vld [vmem:[#allocation2] sm:$0xff]
          %v1856 = vld [vmem:[#allocation2 + $0x8] sm:$0xff]
          %v1857 = vld [vmem:[%s7] sm:$0x3]
          %v1858 = vld [vmem:[%s8] sm:$0x3]
          %v1859 = vadd.f32 %v1855, %v1856
          %1860 = vadd.xlane.f32.xlu0 %v1859
          %v1861 = vpop.xlane.xlu0 %1860
          %v1862 = vmul.f32 %v1861, %v463
          %v1863 = vsub.f32 %v1855, %v1862
          %v1864 = vsub.f32 %v1856, %v1862
          %v1865 = vmul.f32 %v1863, %v1863
          %v1866 = vmul.f32 %v1864, %v1864
          %v1867 = vadd.f32 %v1865, %v1866
          %1868 = vadd.xlane.f32.xlu0 %v1867
          %v1869 = vpop.xlane.xlu0 %1868
          %v1870 = vmul.f32 %v1869, 0.003921569
          %v1871 = vrsqrt.pop %v1870
          %v1872 = vmul.f32 %v1870, %v1871
          %vm1873 = vcmp.eq.f32.partialorder %v1870, inf
          %v1874 = vsel %vm1873, %v1870, %v1872
          %vm1875 = vcmp.eq.f32.partialorder %v1870, 0.0
          %v1876 = vand.u32 %v1870, 2147483648
          %v1877 = vsel %vm1875, %v1876, %v1874
          %v1878 = vadd.f32 %v1877, 1e-06
          %v1879 = vrcp.pop %v1878
          %v1881 = vlaneseq
          %v1882 = vshrl.u32 %v1881, 7
          %v1883 = vsub.s32 0, %v1882
          %v1884 = vrot.slane %v1857, %v1883
          %v1885 = vlaneseq
          %v1886 = vshrl.u32 %v1885, 7
          %v1887 = vsub.s32 1, %v1886
          %v1888 = vrot.slane %v1857, %v1887
          %v1891 = vmul.f32 %v1884, %v1863
          %v1892 = vmul.f32 %v1888, %v1864
          %v1893 = vmul.f32 %v1891, %v1879
          %v1894 = vmul.f32 %v1892, %v1879
          %v1896 = vlaneseq
          %v1897 = vshrl.u32 %v1896, 7
          %v1898 = vsub.s32 0, %v1897
          %v1899 = vrot.slane %v1858, %v1898
          %v1900 = vlaneseq
          %v1901 = vshrl.u32 %v1900, 7
          %v1902 = vsub.s32 1, %v1901
          %v1903 = vrot.slane %v1858, %v1902
          %v1906 = vadd.f32 %v1893, %v1899
          %v1907 = vadd.f32 %v1894, %v1903
          %1908 = vst [vmem:[%s417] sm:$0xff] %v1906
          %1909 = vst [vmem:[%s417 + $0x8] sm:$0xff] %v1907
        $region64: #{aoa_refiner_core.1} parent=55 // pred_fallthru
          _
        %s1910 = sand.u32 %s267, 1
        %s1911 = scalar_lea.sflag [#allocation4], %s1910
        %s1912 = sand.u32 %s267, 1
        %s1913 = smul.addr %s1912, 16
        %s1914 = scalar_lea.vmem [#allocation3], %s1913
        // Predicated region
        $region65: #{aoa_refiner_core.1} parent=55 // pred_check
          %p1915 = pneg %p277
        $region66: #{aoa_refiner_core.1} parent=55 // pred_check_branch
          %1917 = sbr.rel (%p1915) target = $region68
        $region67: #{aoa_refiner_core.1} parent=55 // pred_region
          %s1919 = ssub.s32 256, 256
          %1920 = vsyncadd %s1911, %s1919
          %s1921 = smul.addr %s27, 2
          %s1922 = smul.addr %s1921, 128
          %s1923 = scalar_lea.hbm %s9, %s1922
          %s1925 = sshll.u32 %s1914, 4
          %s1926 = int_to_ptr.vmem [resolvable:$true] %s1925
          %1928 = dma.vmem_to_hbm [thread:$0]  %s1926, 256, %s1923, %s1911
        $region68: #{aoa_refiner_core.1} parent=55 // pred_fallthru
          _
      $region56: #{aoa_refiner_core.1} parent=5 // pred_fallthru
        _
      %p1929 = scmp.le.s32.totalorder 2, %s18
      // Predicated region
      $region69: #{aoa_refiner_core.1} parent=5 // pred_check
        %p1930 = pneg %p1929
      $region70: #{aoa_refiner_core.1} parent=5 // pred_check_branch
        %1932 = sbr.rel (%p1930) target = $region72
      $region71: #{aoa_refiner_core.1} parent=5 // pred_region
        %s1933 = ssub.s32 %s18, 2
        // Predicated region
        $region73: #{aoa_refiner_core.1} parent=71 // pred_check
          %p1934 = pneg %p283
        $region74: #{aoa_refiner_core.1} parent=71 // pred_check_branch
          %1936 = sbr.rel (%p1934) target = $region76
        $region75: #{aoa_refiner_core.1} parent=71 // pred_region
          %s1937 = sand.u32 %s268, 1
          %s1938 = scalar_lea.sflag [#allocation4], %s1937
          %s1939 = sand.u32 %s268, 1
          %s1940 = smul.addr %s1939, 16
          %s1941 = scalar_lea.vmem [#allocation3], %s1940
          %1942 = dma.done %s1938, 256
        $region76: #{aoa_refiner_core.1} parent=71 // pred_fallthru
          _
      $region72: #{aoa_refiner_core.1} parent=5 // pred_fallthru
        _
    $region6: #{aoa_refiner_core.1} parent=1 // loop_footer
      %s22 = sadd.s32 1, %s18
    $region7: #{aoa_refiner_core.1} parent=1 // loop_footer_branch
      %17 = sbr.rel target = $region3
    $region8: #{aoa_refiner_core.1} parent=1 // loop_exit
      _
    %1943 = vsyncpa [#allocation4], 1
    %s1944 = scalar_lea.sflag [#allocation4], 1
    %1945 = vsyncpa %s1944, 1

</llo_original>
